<compile_context>
chip_gen: v7x
topology: tpu7x:2x2x1
jax: 0.10.0
libtpu: 0.0.40
codegen_flags: <defaults>
</compile_context>

<pallas_src>
import functools
import numpy as np

import jax
import jax.numpy as jnp
from jax.experimental import pallas as pl
from jax.experimental.pallas import tpu as pltpu


# ----------------------------------------------------------------------------
# Pallas kernel: one batch block per grid step, whole forward fused.
# ----------------------------------------------------------------------------
def _select_node1_kernel(node_ref, edge_ref, nadj_ref, eadj_ref, dv_ref,
                         de_ref, t_ref, w_ref, p_ref, b_ref,
                         emb_ref, prob_ref, *, edge_chunk):
    f32 = jnp.float32
    Bb, N, Fn = node_ref.shape
    E, Fe = edge_ref.shape[-2], edge_ref.shape[-1]
    H = w_ref.shape[-1]

    def proj(h, w):
        # (Bb, R, F) @ (F, Ho) -> (Bb, R, Ho): batched contraction, no reshape.
        return jnp.einsum('brf,fh->brh', h, w, preferred_element_type=f32)

    def bmm(spec, a, b):
        return jnp.einsum(spec, a, b, preferred_element_type=f32)

    # Loads.  Inputs may arrive in bf16 (wire format); all math is f32.
    node = node_ref[...].astype(f32)                      # (Bb, N, Fn)
    edge = edge_ref[...].astype(f32)                      # (Bb, E, Fe)
    dv = dv_ref[...].astype(f32)                          # (Bb,1,N) or (1,N)
    de = de_ref[...].astype(f32)                          # (Bb,1,E) or (1,E)
    T = t_ref[...].astype(f32)                            # (Bb,N,E) or (N,E)
    if len(t_ref.shape) == 2:                             # batch-invariant graph
        T = jnp.broadcast_to(T, (Bb,) + T.shape)
    Tt = jnp.swapaxes(T, -1, -2)                          # (Bb, E, N), reused 4x

    # Normalized adjacencies via elementwise diagonal scaling (VPU, no MXU).
    Av = nadj_ref[...].astype(f32) * jnp.swapaxes(dv, -1, -2) * dv
    Ae = eadj_ref[...].astype(f32) * jnp.swapaxes(de, -1, -2) * de

    # Unpack consolidated parameters (always f32).
    w_all = w_ref[...]                                    # (5, Dmax, H)
    p_all = p_ref[...]                                    # (Dmax, 5)
    b_all = b_ref[...]                                    # (6, H)
    wn1 = w_all[0, :Fn, :]
    we1 = w_all[1, :Fe, :]
    wn2 = w_all[2, :H, :]
    we2 = w_all[3, :H, :]
    wp1 = w_all[4, :H, :]
    pe1 = p_all[:Fe, 0:1]
    pv1 = p_all[:H, 1:2]
    pe2 = p_all[:H, 2:3]
    pv2 = p_all[:H, 3:4]
    wp2 = p_all[:H, 4:5]
    bn1, be1, bn2, be2, bp1 = (b_all[0], b_all[1], b_all[2], b_all[3],
                               b_all[4])
    bp2 = b_all[5:6, 0:1]                                 # (1, 1)

    def censnet(h_v, h_e, Wn, bn, pe, We, be, pv):
        # node update gated by edge features: T diag(ge) T^T
        ge = proj(h_e, pe)                                        # (Bb, E, 1)
        Mv = bmm('bne,bem->bnm', T, Tt * ge)                      # (Bb, N, N)
        hv_new = jnp.maximum(
            bmm('bnm,bmh->bnh', Mv * Av, proj(h_v, Wn)) + bn, 0.0)
        # edge update gated by updated node features: T^T diag(gv) T,
        # chunked over E rows so the (E,E) intermediate stays small.
        gv = proj(hv_new, pv)                                     # (Bb, N, 1)
        Tgv = T * gv                                              # (Bb, N, E)
        he_proj = proj(h_e, We)                                   # (Bb, E, H)
        rows = []
        for c0 in range(0, E, edge_chunk):
            c1 = min(c0 + edge_chunk, E)
            Me_c = bmm('ben,bnm->bem', Tt[:, c0:c1, :], Tgv)      # (Bb, Ec, E)
            Ae_c = Ae[..., c0:c1, :]
            rows.append(jnp.maximum(
                bmm('bef,bfh->beh', Me_c * Ae_c, he_proj) + be, 0.0))
        he_new = rows[0] if len(rows) == 1 else jnp.concatenate(rows, axis=-2)
        return hv_new, he_new

    hv, he = censnet(node, edge, wn1, bn1, pe1, we1, be1, pv1)
    hv, he = censnet(hv, he, wn2, bn2, pe2, we2, be2, pv2)

    emb_ref[...] = hv.astype(emb_ref.dtype)
    # TODO(synk): if production H < 128, fold emb into a lane-dense
    # (num_blocks, Bblk, N*H) slab as well (needs an in-kernel relayout).

    # actor head: relu(linear) -> linear -> softmax over nodes.
    v = jnp.maximum(proj(hv, wp1) + bp1, 0.0)                     # (Bb, N, H)
    scores = jnp.swapaxes(proj(v, wp2) + bp2, -1, -2)             # (Bb, 1, N)
    scores = scores - jnp.max(scores, axis=-1, keepdims=True)
    ex = jnp.exp(scores)
    inv = pl.reciprocal(jnp.sum(ex, axis=-1, keepdims=True), approx=True)
    probs = ex * inv                                              # (Bb, 1, N)
    # Lane-dense store: one (1, 1, Bblk*N) row per grid step.
    prob_ref[...] = probs.reshape(1, 1, Bb * N).astype(prob_ref.dtype)


# ----------------------------------------------------------------------------
# Batch-block sizing from a VMEM budget (v7x: 64 MiB, v5e/v6e: 128 MiB).
# ----------------------------------------------------------------------------
def _pick_batch_block(B, N, E, Fn, Fe, H, edge_chunk, shared_graph,
                      in_itemsize, vmem_budget, max_batch_block):
    dmax = max(Fn, Fe, H)

    def vmem_estimate(bblk):
        graph_elems = N * N + E * E + N * E + N + E
        graph_in = graph_elems * (1 if shared_graph else bblk)
        feat_in = bblk * (N * Fn + E * Fe)
        param_b = (5 * dmax * H + dmax * 5 + 6 * H) * 4
        inputs = 2 * in_itemsize * (graph_in + feat_in) + 2 * param_b
        live = 4 * bblk * (2 * N * N + E * E + 2 * edge_chunk * E + 2 * N * E
                           + 4 * N * H + 4 * E * H)
        outs = 2 * 4 * bblk * (N * H + N)
        return inputs + live + outs

    cap = B if max_batch_block is None else max(1, int(max_batch_block))
    cap = min(cap, max(1, B // 2))   # keep >=2 grid steps (megacore/pipeline)
    best = 1
    for d in range(1, cap + 1):
        if B % d == 0 and vmem_estimate(d) <= vmem_budget:
            best = d
    return best


# ----------------------------------------------------------------------------
# Wrapper.
# ----------------------------------------------------------------------------
def select_node1_forward(node, edge, node_adj, edge_adj, d_v, d_e, t, params,
                         *, max_batch_block=None, edge_chunk=None,
                         compute_dtype=jnp.bfloat16):
    """Pallas forward of Select_node1_model. Returns (emb_node, probs).

    Graph tensors (node_adj, edge_adj, D_v, D_e, T) may be passed batched
    (B, ...) or un-batched (...); un-batched ("shared") tensors are DMAed once
    per grid step instead of once per batch element.
    TODO(synk): remove_index column-drop before the softmax is not implemented
    (the PyTorch default remove_index=False path is what is computed)."""
    B, N, Fn = node.shape
    E, Fe = edge.shape[-2], edge.shape[-1]
    H = params["wn1"].shape[1]
    Dmax = max(Fn, Fe, H)
    shared_graph = (t.ndim == 2)

    if edge_chunk is None:
        edge_chunk = E if E <= 512 else 256
    edge_chunk = max(1, min(int(edge_chunk), E))

    # Ship only the diagonals of the (diagonal) degree-normalization matrices.
    # TODO(synk): only valid because D_v / D_e are strictly diagonal.
    if shared_graph:
        dv = jnp.diagonal(d_v).reshape(1, N).astype(jnp.float32)
        de = jnp.diagonal(d_e).reshape(1, E).astype(jnp.float32)
    else:
        dv = jnp.diagonal(d_v, axis1=-2, axis2=-1).reshape(B, 1, N).astype(
            jnp.float32)
        de = jnp.diagonal(d_e, axis1=-2, axis2=-1).reshape(B, 1, E).astype(
            jnp.float32)

    # bf16 on the wire (halves HBM->VMEM bytes); all math stays f32 in-kernel.
    node_c = node.astype(compute_dtype)
    edge_c = edge.astype(compute_dtype)
    nadj_c = node_adj.astype(compute_dtype)
    eadj_c = edge_adj.astype(compute_dtype)
    t_c = t.astype(compute_dtype)

    # Pack the 16 tiny parameter tensors into 3 consolidated arrays (f32).
    def pad_mat(w):
        return jnp.zeros((Dmax, H), jnp.float32).at[:w.shape[0], :].set(w)

    def pad_vec(v):
        return jnp.zeros((Dmax,), jnp.float32).at[:v.shape[0]].set(v[:, 0])

    w_pack = jnp.stack([pad_mat(params["wn1"]), pad_mat(params["we1"]),
                        pad_mat(params["wn2"]), pad_mat(params["we2"]),
                        pad_mat(params["wp1"])])                  # (5, Dmax, H)
    p_pack = jnp.stack([pad_vec(params["pe1"]), pad_vec(params["pv1"]),
                        pad_vec(params["pe2"]), pad_vec(params["pv2"]),
                        pad_vec(params["wp2"])], axis=1)          # (Dmax, 5)
    bp2_row = jnp.zeros((1, H), jnp.float32).at[0, 0].set(params["bp2"][0, 0])
    b_pack = jnp.concatenate([params["bn1"], params["be1"], params["bn2"],
                              params["be2"], params["bp1"], bp2_row],
                             axis=0)                              # (6, H)

    # VMEM-budgeted batch block + explicit scoped limit.
    try:
        vmem_cap = int(pltpu.get_tpu_info().vmem_capacity_bytes)
    except Exception:
        vmem_cap = 64 * 1024 * 1024
    vmem_limit = max(32 * 1024 * 1024,
                     min(vmem_cap * 3 // 4, 100 * 1024 * 1024))
    in_bytes = jnp.dtype(compute_dtype).itemsize
    Bblk = _pick_batch_block(B, N, E, Fn, Fe, H, edge_chunk, shared_graph,
                             in_bytes, int(0.6 * vmem_limit), max_batch_block)
    num_blocks = B // Bblk
    grid = (num_blocks,)

    def batched(*tail):
        nd = len(tail)
        return pl.BlockSpec((Bblk,) + tail,
                            lambda b, _nd=nd: (b,) + (0,) * _nd)

    def shared(shape):
        nd = len(shape)
        return pl.BlockSpec(tuple(shape), lambda b, _nd=nd: (0,) * _nd)

    def gspec(x):
        return shared(x.shape) if shared_graph else batched(*x.shape[1:])

    # TODO(synk): on v6e (128 MiB VMEM), try pipeline_mode=pl.Buffered(3) on
    # the two adjacency inputs once the grid has >=3 steps.
    in_specs = [
        batched(N, Fn), batched(E, Fe),
        gspec(nadj_c), gspec(eadj_c), gspec(dv), gspec(de), gspec(t_c),
        shared(w_pack.shape), shared(p_pack.shape), shared(b_pack.shape),
    ]
    out_specs = [
        pl.BlockSpec((Bblk, N, H), lambda b: (b, 0, 0)),
        pl.BlockSpec((1, 1, Bblk * N), lambda b: (b, 0, 0)),  # lane-dense probs
    ]

    kernel = functools.partial(_select_node1_kernel, edge_chunk=edge_chunk)
    emb, probs = pl.pallas_call(
        kernel,
        out_shape=(jax.ShapeDtypeStruct((B, N, H), jnp.float32),
                   jax.ShapeDtypeStruct((num_blocks, 1, Bblk * N),
                                        jnp.float32)),
        grid_spec=pltpu.PrefetchScalarGridSpec(
            num_scalar_prefetch=0,
            grid=grid,
            in_specs=in_specs,
            out_specs=out_specs,
        ),
        compiler_params=pltpu.CompilerParams(
            dimension_semantics=("parallel",),
            vmem_limit_bytes=int(vmem_limit)),
    )(node_c, edge_c, nadj_c, eadj_c, dv, de, t_c, w_pack, p_pack, b_pack)
    return emb, probs.reshape(B, N)


# ----------------------------------------------------------------------------
# Pure-JAX reference (same math, batched, full dense D matrices).
# ----------------------------------------------------------------------------
def _reference(node, edge, node_adj, edge_adj, d_v, d_e, t, p):
    def one(nd, ed, Avr, Aer, Dv, De, T):
        Av = Dv @ Avr @ Dv
        Ae = De @ Aer @ De

        def layer(hv, he, Wn, bn, pe, We, be, pv):
            ge = he @ pe
            Mv = (T * ge.T) @ T.T
            hv_new = jax.nn.relu((Mv * Av) @ (hv @ Wn) + bn)
            gv = hv_new @ pv
            Me = (T.T * gv.T) @ T
            he_new = jax.nn.relu((Me * Ae) @ (he @ We) + be)
            return hv_new, he_new

        hv, he = layer(nd, ed, p["wn1"], p["bn1"], p["pe1"],
                       p["we1"], p["be1"], p["pv1"])
        hv, he = layer(hv, he, p["wn2"], p["bn2"], p["pe2"],
                       p["we2"], p["be2"], p["pv2"])
        emb = hv
        v = jax.nn.relu(hv @ p["wp1"] + p["bp1"])
        s = (v @ p["wp2"] + p["bp2"])[:, 0]                 # (N,)
        return emb, jax.nn.softmax(s, axis=-1)

    return jax.vmap(one)(node, edge, node_adj, edge_adj, d_v, d_e, t)


# ----------------------------------------------------------------------------
# Deterministic parameter / input construction.
# ----------------------------------------------------------------------------
def _init_params(key, fn, fe, h):
    def lin(k, fan_in, shape):
        bound = 1.0 / jnp.sqrt(fan_in)
        return jax.random.uniform(k, shape, jnp.float32, -bound, bound)

    ks = jax.random.split(key, 16)
    return {
        # GCN1
        "wn1": lin(ks[0], fn, (fn, h)), "bn1": lin(ks[1], fn, (1, h)),
        "pe1": lin(ks[2], fe, (fe, 1)),
        "we1": lin(ks[3], fe, (fe, h)), "be1": lin(ks[4], fe, (1, h)),
        "pv1": lin(ks[5], h, (h, 1)),
        # GCN2
        "wn2": lin(ks[6], h, (h, h)), "bn2": lin(ks[7], h, (1, h)),
        "pe2": lin(ks[8], h, (h, 1)),
        "we2": lin(ks[9], h, (h, h)), "be2": lin(ks[10], h, (1, h)),
        "pv2": lin(ks[11], h, (h, 1)),
        # predict_v1 / predict_v2
        "wp1": lin(ks[12], h, (h, h)), "bp1": lin(ks[13], h, (1, h)),
        "wp2": lin(ks[14], h, (h, 1)), "bp2": lin(ks[15], h, (1, 1)),
    }


def _build_graph(key, b, n, e, fn, fe):
    k1, k2 = jax.random.split(key)
    node = jax.random.normal(k1, (b, n, fn), jnp.float32)
    edge = jax.random.normal(k2, (b, e, fe), jnp.float32)

    # Incidence matrix T (N, E): ring edges + chords (deterministic pattern).
    T_np = np.zeros((n, e), dtype=np.float32)
    pairs = [(i, (i + 1) % n) for i in range(n)]          # ring: n edges
    pairs += [(i, (i + 3) % n) for i in range(e - n)]     # chords
    for idx, (i, j) in enumerate(pairs[:e]):
        T_np[i, idx] = 1.0
        T_np[j, idx] = 1.0

    A_v = (T_np @ T_np.T > 0).astype(np.float32)          # node adj (+ self)
    A_e = (T_np.T @ T_np > 0).astype(np.float32)          # line-graph adj
    D_v = np.diag(1.0 / np.sqrt(A_v.sum(axis=1) + 1e-6)).astype(np.float32)
    D_e = np.diag(1.0 / np.sqrt(A_e.sum(axis=1) + 1e-6)).astype(np.float32)

    # Graph structure is batch-invariant -> return UN-batched (shared) tensors.
    return (node, edge, jnp.asarray(A_v), jnp.asarray(A_e),
            jnp.asarray(D_v), jnp.asarray(D_e), jnp.asarray(T_np))


if __name__ == "__main__":
    B, N, E = 2, 8, 16
    Fn, Fe, H = 4, 4, 32    # node_in, edge_in, node_out(=edge_out)

    key = jax.random.PRNGKey(0)
    k_graph, k_param = jax.random.split(key)
    node, edge, A_v, A_e, D_v, D_e, T = _build_graph(k_graph, B, N, E, Fn, Fe)
    params = _init_params(k_param, Fn, Fe, H)

    # Graph tensors passed UN-batched (shared across the batch); edge_chunk=8
    # also exercises the chunked (E,E) edge-update path at these tiny shapes.
    emb, probs = select_node1_forward(node, edge, A_v, A_e, D_v, D_e, T,
                                      params, edge_chunk=8)
    emb = jax.block_until_ready(emb)
    probs = jax.block_until_ready(probs)

    # Reference: f32 math on bf16-quantized features (kernel ships features in
    # bf16), batched dense-D formulation.
    cast = lambda x: x.astype(jnp.bfloat16).astype(jnp.float32)
    tile = lambda x: jnp.broadcast_to(x, (B,) + x.shape)
    emb_ref, probs_ref = _reference(cast(node), cast(edge), tile(A_v),
                                    tile(A_e), tile(D_v), tile(D_e), tile(T),
                                    params)

    assert emb.shape == (B, N, H), emb.shape
    assert probs.shape == (B, N), probs.shape
    assert jnp.allclose(emb, emb_ref, atol=1e-2, rtol=1e-2)
    assert jnp.allclose(probs, probs_ref, atol=1e-2, rtol=1e-2)
    assert jnp.allclose(jnp.sum(probs, axis=-1), 1.0, atol=1e-2)
    print("KERNEL_OK")
</pallas_src>

<mosaic_0001>
module attributes {stable_mosaic.version = 11 : i64} {
  func.func @_select_node1_kernel(%arg0: i32, %arg1: memref<1x8x4xbf16, #tpu.memory_space<vmem>>, %arg2: memref<1x16x4xbf16, #tpu.memory_space<vmem>>, %arg3: memref<8x8xbf16, #tpu.memory_space<vmem>>, %arg4: memref<16x16xbf16, #tpu.memory_space<vmem>>, %arg5: memref<1x8xf32, #tpu.memory_space<vmem>>, %arg6: memref<1x16xf32, #tpu.memory_space<vmem>>, %arg7: memref<8x16xbf16, #tpu.memory_space<vmem>>, %arg8: memref<5x32x32xf32, #tpu.memory_space<vmem>>, %arg9: memref<32x5xf32, #tpu.memory_space<vmem>>, %arg10: memref<6x32xf32, #tpu.memory_space<vmem>>, %arg11: memref<1x8x32xf32, #tpu.memory_space<vmem>>, %arg12: memref<1x1x8xf32, #tpu.memory_space<vmem>>) attributes {dimension_semantics = [#tpu.dimension_semantics<parallel>], iteration_bounds = array<i64: 2>, scalar_prefetch = 0 : i64, scratch_operands = 0 : i64, tpu.core_type = #tpu.core_type<tc>, window_params = [{transform_indices = @transform_0, window_bounds = array<i64: 1, 8, 4>}, {transform_indices = @transform_1, window_bounds = array<i64: 1, 16, 4>}, {pipeline_mode = #tpu.pipeline_mode<synchronous>, transform_indices = @transform_2, window_bounds = array<i64: 8, 8>}, {pipeline_mode = #tpu.pipeline_mode<synchronous>, transform_indices = @transform_3, window_bounds = array<i64: 16, 16>}, {pipeline_mode = #tpu.pipeline_mode<synchronous>, transform_indices = @transform_4, window_bounds = array<i64: 1, 8>}, {pipeline_mode = #tpu.pipeline_mode<synchronous>, transform_indices = @transform_5, window_bounds = array<i64: 1, 16>}, {pipeline_mode = #tpu.pipeline_mode<synchronous>, transform_indices = @transform_6, window_bounds = array<i64: 8, 16>}, {pipeline_mode = #tpu.pipeline_mode<synchronous>, transform_indices = @transform_7, window_bounds = array<i64: 5, 32, 32>}, {pipeline_mode = #tpu.pipeline_mode<synchronous>, transform_indices = @transform_8, window_bounds = array<i64: 32, 5>}, {pipeline_mode = #tpu.pipeline_mode<synchronous>, transform_indices = @transform_9, window_bounds = array<i64: 6, 32>}, {transform_indices = @transform_10, window_bounds = array<i64: 1, 8, 32>}, {transform_indices = @transform_11, window_bounds = array<i64: 1, 1, 8>}]} {
    %c0 = arith.constant 0 : index
    %c0_0 = arith.constant 0 : index
    %c0_1 = arith.constant 0 : index
    %0 = vector.load %arg1[%c0, %c0_0, %c0_1] : memref<1x8x4xbf16, #tpu.memory_space<vmem>>, vector<1x8x4xbf16>
    %1 = arith.extf %0 : vector<1x8x4xbf16> to vector<1x8x4xf32>
    %c0_2 = arith.constant 0 : index
    %c0_3 = arith.constant 0 : index
    %c0_4 = arith.constant 0 : index
    %2 = vector.load %arg2[%c0_2, %c0_3, %c0_4] : memref<1x16x4xbf16, #tpu.memory_space<vmem>>, vector<1x16x4xbf16>
    %3 = arith.extf %2 : vector<1x16x4xbf16> to vector<1x16x4xf32>
    %c0_5 = arith.constant 0 : index
    %c0_6 = arith.constant 0 : index
    %4 = vector.load %arg5[%c0_5, %c0_6] : memref<1x8xf32, #tpu.memory_space<vmem>>, vector<1x8xf32>
    %c0_7 = arith.constant 0 : index
    %c0_8 = arith.constant 0 : index
    %5 = vector.load %arg6[%c0_7, %c0_8] : memref<1x16xf32, #tpu.memory_space<vmem>>, vector<1x16xf32>
    %c0_9 = arith.constant 0 : index
    %c0_10 = arith.constant 0 : index
    %6 = vector.load %arg7[%c0_9, %c0_10] : memref<8x16xbf16, #tpu.memory_space<vmem>>, vector<8x16xbf16>
    %7 = arith.extf %6 : vector<8x16xbf16> to vector<8x16xf32>
    %8 = vector.shape_cast %7 : vector<8x16xf32> to vector<1x8x16xf32>
    %9 = tpu.transpose %8, [0, 2, 1] : vector<1x8x16xf32> -> vector<1x16x8xf32>
    %c0_11 = arith.constant 0 : index
    %c0_12 = arith.constant 0 : index
    %10 = vector.load %arg3[%c0_11, %c0_12] : memref<8x8xbf16, #tpu.memory_space<vmem>>, vector<8x8xbf16>
    %11 = arith.extf %10 : vector<8x8xbf16> to vector<8x8xf32>
    %12 = tpu.transpose %4, [1, 0] : vector<1x8xf32> -> vector<8x1xf32>
    %13 = vector.broadcast %12 : vector<8x1xf32> to vector<8x8xf32>
    %14 = arith.mulf %11, %13 : vector<8x8xf32>
    %15 = vector.broadcast %4 : vector<1x8xf32> to vector<8x8xf32>
    %16 = arith.mulf %14, %15 : vector<8x8xf32>
    %c0_13 = arith.constant 0 : index
    %c0_14 = arith.constant 0 : index
    %17 = vector.load %arg4[%c0_13, %c0_14] : memref<16x16xbf16, #tpu.memory_space<vmem>>, vector<16x16xbf16>
    %18 = arith.extf %17 : vector<16x16xbf16> to vector<16x16xf32>
    %19 = tpu.transpose %5, [1, 0] : vector<1x16xf32> -> vector<16x1xf32>
    %20 = vector.broadcast %19 : vector<16x1xf32> to vector<16x16xf32>
    %21 = arith.mulf %18, %20 : vector<16x16xf32>
    %22 = vector.broadcast %5 : vector<1x16xf32> to vector<16x16xf32>
    %23 = arith.mulf %21, %22 : vector<16x16xf32>
    %c0_15 = arith.constant 0 : index
    %c0_16 = arith.constant 0 : index
    %c0_17 = arith.constant 0 : index
    %24 = vector.load %arg8[%c0_15, %c0_16, %c0_17] : memref<5x32x32xf32, #tpu.memory_space<vmem>>, vector<5x32x32xf32>
    %c0_18 = arith.constant 0 : index
    %c0_19 = arith.constant 0 : index
    %25 = vector.load %arg9[%c0_18, %c0_19] : memref<32x5xf32, #tpu.memory_space<vmem>>, vector<32x5xf32>
    %c0_20 = arith.constant 0 : index
    %c0_21 = arith.constant 0 : index
    %26 = vector.load %arg10[%c0_20, %c0_21] : memref<6x32xf32, #tpu.memory_space<vmem>>, vector<6x32xf32>
    %27 = vector.extract_strided_slice %24 {offsets = [0, 0, 0], sizes = [1, 4, 32], strides = [1, 1, 1]} : vector<5x32x32xf32> to vector<1x4x32xf32>
    %28 = vector.shape_cast %27 : vector<1x4x32xf32> to vector<4x32xf32>
    %29 = vector.extract_strided_slice %24 {offsets = [1, 0, 0], sizes = [1, 4, 32], strides = [1, 1, 1]} : vector<5x32x32xf32> to vector<1x4x32xf32>
    %30 = vector.shape_cast %29 : vector<1x4x32xf32> to vector<4x32xf32>
    %31 = vector.extract_strided_slice %24 {offsets = [2, 0, 0], sizes = [1, 32, 32], strides = [1, 1, 1]} : vector<5x32x32xf32> to vector<1x32x32xf32>
    %32 = vector.shape_cast %31 : vector<1x32x32xf32> to vector<32x32xf32>
    %33 = vector.extract_strided_slice %24 {offsets = [4, 0, 0], sizes = [1, 32, 32], strides = [1, 1, 1]} : vector<5x32x32xf32> to vector<1x32x32xf32>
    %34 = vector.shape_cast %33 : vector<1x32x32xf32> to vector<32x32xf32>
    %35 = vector.extract_strided_slice %25 {offsets = [0, 0], sizes = [4, 1], strides = [1, 1]} : vector<32x5xf32> to vector<4x1xf32>
    %36 = vector.extract_strided_slice %25 {offsets = [0, 1], sizes = [32, 1], strides = [1, 1]} : vector<32x5xf32> to vector<32x1xf32>
    %37 = vector.extract_strided_slice %25 {offsets = [0, 2], sizes = [32, 1], strides = [1, 1]} : vector<32x5xf32> to vector<32x1xf32>
    %38 = vector.extract_strided_slice %25 {offsets = [0, 4], sizes = [32, 1], strides = [1, 1]} : vector<32x5xf32> to vector<32x1xf32>
    %39 = vector.extract_strided_slice %26 {offsets = [0, 0], sizes = [1, 32], strides = [1, 1]} : vector<6x32xf32> to vector<1x32xf32>
    %40 = vector.shape_cast %39 : vector<1x32xf32> to vector<32xf32>
    %41 = vector.extract_strided_slice %26 {offsets = [1, 0], sizes = [1, 32], strides = [1, 1]} : vector<6x32xf32> to vector<1x32xf32>
    %42 = vector.shape_cast %41 : vector<1x32xf32> to vector<32xf32>
    %43 = vector.extract_strided_slice %26 {offsets = [2, 0], sizes = [1, 32], strides = [1, 1]} : vector<6x32xf32> to vector<1x32xf32>
    %44 = vector.shape_cast %43 : vector<1x32xf32> to vector<32xf32>
    %45 = vector.extract_strided_slice %26 {offsets = [4, 0], sizes = [1, 32], strides = [1, 1]} : vector<6x32xf32> to vector<1x32xf32>
    %46 = vector.shape_cast %45 : vector<1x32xf32> to vector<32xf32>
    %47 = vector.extract_strided_slice %26 {offsets = [5, 0], sizes = [1, 1], strides = [1, 1]} : vector<6x32xf32> to vector<1x1xf32>
    "tpu.trace_start"() <{level = 10 : i32, message = "brf,fh->brh"}> : () -> ()
    %cst = arith.constant dense<0.000000e+00> : vector<1x16x1xf32>
    %48 = tpu.matmul %3, %35, %cst {dimension_numbers = #tpu.dot_dimension_numbers<[2], [0], [0, 1], [1], [0, 0, 0, 1, 1, 1], [], []>} : vector<1x16x4xf32>, vector<4x1xf32>, vector<1x16x1xf32> -> vector<1x16x1xf32>
    "tpu.trace_stop"() : () -> ()
    %49 = vector.broadcast %48 : vector<1x16x1xf32> to vector<1x16x8xf32>
    %50 = arith.mulf %9, %49 : vector<1x16x8xf32>
    "tpu.trace_start"() <{level = 10 : i32, message = "bne,bem->bnm"}> : () -> ()
    %cst_22 = arith.constant dense<0.000000e+00> : vector<1x8x8xf32>
    %51 = tpu.matmul %8, %50, %cst_22 {dimension_numbers = #tpu.dot_dimension_numbers<[2], [1], [1], [2], [0, 0, 0, 1, 1, 2], [0], [0]>} : vector<1x8x16xf32>, vector<1x16x8xf32>, vector<1x8x8xf32> -> vector<1x8x8xf32>
    "tpu.trace_stop"() : () -> ()
    %52 = vector.shape_cast %16 : vector<8x8xf32> to vector<1x8x8xf32>
    %53 = arith.mulf %51, %52 : vector<1x8x8xf32>
    "tpu.trace_start"() <{level = 10 : i32, message = "brf,fh->brh"}> : () -> ()
    %cst_23 = arith.constant dense<0.000000e+00> : vector<1x8x32xf32>
    %54 = tpu.matmul %1, %28, %cst_23 {dimension_numbers = #tpu.dot_dimension_numbers<[2], [0], [0, 1], [1], [0, 0, 0, 1, 1, 1], [], []>} : vector<1x8x4xf32>, vector<4x32xf32>, vector<1x8x32xf32> -> vector<1x8x32xf32>
    "tpu.trace_stop"() : () -> ()
    "tpu.trace_start"() <{level = 10 : i32, message = "bnm,bmh->bnh"}> : () -> ()
    %cst_24 = arith.constant dense<0.000000e+00> : vector<1x8x32xf32>
    %55 = tpu.matmul %53, %54, %cst_24 {dimension_numbers = #tpu.dot_dimension_numbers<[2], [1], [1], [2], [0, 0, 0, 1, 1, 2], [0], [0]>} : vector<1x8x8xf32>, vector<1x8x32xf32>, vector<1x8x32xf32> -> vector<1x8x32xf32>
    "tpu.trace_stop"() : () -> ()
    %56 = vector.shape_cast %40 : vector<32xf32> to vector<1x1x32xf32>
    %57 = vector.broadcast %56 : vector<1x1x32xf32> to vector<1x8x32xf32>
    %58 = arith.addf %55, %57 : vector<1x8x32xf32>
    %cst_25 = arith.constant 0.000000e+00 : f32
    %59 = vector.broadcast %cst_25 : f32 to vector<1x8x32xf32>
    %60 = arith.maximumf %58, %59 : vector<1x8x32xf32>
    "tpu.trace_start"() <{level = 10 : i32, message = "brf,fh->brh"}> : () -> ()
    %cst_26 = arith.constant dense<0.000000e+00> : vector<1x8x1xf32>
    %61 = tpu.matmul %60, %36, %cst_26 {dimension_numbers = #tpu.dot_dimension_numbers<[2], [0], [0, 1], [1], [0, 0, 0, 1, 1, 1], [], []>} : vector<1x8x32xf32>, vector<32x1xf32>, vector<1x8x1xf32> -> vector<1x8x1xf32>
    "tpu.trace_stop"() : () -> ()
    %62 = vector.broadcast %61 : vector<1x8x1xf32> to vector<1x8x16xf32>
    %63 = arith.mulf %8, %62 : vector<1x8x16xf32>
    "tpu.trace_start"() <{level = 10 : i32, message = "brf,fh->brh"}> : () -> ()
    %cst_27 = arith.constant dense<0.000000e+00> : vector<1x16x32xf32>
    %64 = tpu.matmul %3, %30, %cst_27 {dimension_numbers = #tpu.dot_dimension_numbers<[2], [0], [0, 1], [1], [0, 0, 0, 1, 1, 1], [], []>} : vector<1x16x4xf32>, vector<4x32xf32>, vector<1x16x32xf32> -> vector<1x16x32xf32>
    "tpu.trace_stop"() : () -> ()
    %65 = vector.extract_strided_slice %9 {offsets = [0, 0, 0], sizes = [1, 8, 8], strides = [1, 1, 1]} : vector<1x16x8xf32> to vector<1x8x8xf32>
    "tpu.trace_start"() <{level = 10 : i32, message = "ben,bnm->bem"}> : () -> ()
    %cst_28 = arith.constant dense<0.000000e+00> : vector<1x8x16xf32>
    %66 = tpu.matmul %65, %63, %cst_28 {dimension_numbers = #tpu.dot_dimension_numbers<[2], [1], [1], [2], [0, 0, 0, 1, 1, 2], [0], [0]>} : vector<1x8x8xf32>, vector<1x8x16xf32>, vector<1x8x16xf32> -> vector<1x8x16xf32>
    "tpu.trace_stop"() : () -> ()
    %67 = vector.extract_strided_slice %23 {offsets = [0, 0], sizes = [8, 16], strides = [1, 1]} : vector<16x16xf32> to vector<8x16xf32>
    %68 = vector.shape_cast %67 : vector<8x16xf32> to vector<1x8x16xf32>
    %69 = arith.mulf %66, %68 : vector<1x8x16xf32>
    "tpu.trace_start"() <{level = 10 : i32, message = "bef,bfh->beh"}> : () -> ()
    %cst_29 = arith.constant dense<0.000000e+00> : vector<1x8x32xf32>
    %70 = tpu.matmul %69, %64, %cst_29 {dimension_numbers = #tpu.dot_dimension_numbers<[2], [1], [1], [2], [0, 0, 0, 1, 1, 2], [0], [0]>} : vector<1x8x16xf32>, vector<1x16x32xf32>, vector<1x8x32xf32> -> vector<1x8x32xf32>
    "tpu.trace_stop"() : () -> ()
    %71 = vector.shape_cast %42 : vector<32xf32> to vector<1x1x32xf32>
    %72 = vector.broadcast %71 : vector<1x1x32xf32> to vector<1x8x32xf32>
    %73 = arith.addf %70, %72 : vector<1x8x32xf32>
    %cst_30 = arith.constant 0.000000e+00 : f32
    %74 = vector.broadcast %cst_30 : f32 to vector<1x8x32xf32>
    %75 = arith.maximumf %73, %74 : vector<1x8x32xf32>
    %76 = vector.extract_strided_slice %9 {offsets = [0, 8, 0], sizes = [1, 8, 8], strides = [1, 1, 1]} : vector<1x16x8xf32> to vector<1x8x8xf32>
    "tpu.trace_start"() <{level = 10 : i32, message = "ben,bnm->bem"}> : () -> ()
    %cst_31 = arith.constant dense<0.000000e+00> : vector<1x8x16xf32>
    %77 = tpu.matmul %76, %63, %cst_31 {dimension_numbers = #tpu.dot_dimension_numbers<[2], [1], [1], [2], [0, 0, 0, 1, 1, 2], [0], [0]>} : vector<1x8x8xf32>, vector<1x8x16xf32>, vector<1x8x16xf32> -> vector<1x8x16xf32>
    "tpu.trace_stop"() : () -> ()
    %78 = vector.extract_strided_slice %23 {offsets = [8, 0], sizes = [8, 16], strides = [1, 1]} : vector<16x16xf32> to vector<8x16xf32>
    %79 = vector.shape_cast %78 : vector<8x16xf32> to vector<1x8x16xf32>
    %80 = arith.mulf %77, %79 : vector<1x8x16xf32>
    "tpu.trace_start"() <{level = 10 : i32, message = "bef,bfh->beh"}> : () -> ()
    %cst_32 = arith.constant dense<0.000000e+00> : vector<1x8x32xf32>
    %81 = tpu.matmul %80, %64, %cst_32 {dimension_numbers = #tpu.dot_dimension_numbers<[2], [1], [1], [2], [0, 0, 0, 1, 1, 2], [0], [0]>} : vector<1x8x16xf32>, vector<1x16x32xf32>, vector<1x8x32xf32> -> vector<1x8x32xf32>
    "tpu.trace_stop"() : () -> ()
    %82 = vector.shape_cast %42 : vector<32xf32> to vector<1x1x32xf32>
    %83 = vector.broadcast %82 : vector<1x1x32xf32> to vector<1x8x32xf32>
    %84 = arith.addf %81, %83 : vector<1x8x32xf32>
    %cst_33 = arith.constant 0.000000e+00 : f32
    %85 = vector.broadcast %cst_33 : f32 to vector<1x8x32xf32>
    %86 = arith.maximumf %84, %85 : vector<1x8x32xf32>
    %87 = tpu.concatenate %75, %86 in 1 : vector<1x8x32xf32>, vector<1x8x32xf32> -> vector<1x16x32xf32>
    "tpu.trace_start"() <{level = 10 : i32, message = "brf,fh->brh"}> : () -> ()
    %cst_34 = arith.constant dense<0.000000e+00> : vector<1x16x1xf32>
    %88 = tpu.matmul %87, %37, %cst_34 {dimension_numbers = #tpu.dot_dimension_numbers<[2], [0], [0, 1], [1], [0, 0, 0, 1, 1, 1], [], []>} : vector<1x16x32xf32>, vector<32x1xf32>, vector<1x16x1xf32> -> vector<1x16x1xf32>
    "tpu.trace_stop"() : () -> ()
    %89 = vector.broadcast %88 : vector<1x16x1xf32> to vector<1x16x8xf32>
    %90 = arith.mulf %9, %89 : vector<1x16x8xf32>
    "tpu.trace_start"() <{level = 10 : i32, message = "bne,bem->bnm"}> : () -> ()
    %cst_35 = arith.constant dense<0.000000e+00> : vector<1x8x8xf32>
    %91 = tpu.matmul %8, %90, %cst_35 {dimension_numbers = #tpu.dot_dimension_numbers<[2], [1], [1], [2], [0, 0, 0, 1, 1, 2], [0], [0]>} : vector<1x8x16xf32>, vector<1x16x8xf32>, vector<1x8x8xf32> -> vector<1x8x8xf32>
    "tpu.trace_stop"() : () -> ()
    %92 = vector.shape_cast %16 : vector<8x8xf32> to vector<1x8x8xf32>
    %93 = arith.mulf %91, %92 : vector<1x8x8xf32>
    "tpu.trace_start"() <{level = 10 : i32, message = "brf,fh->brh"}> : () -> ()
    %cst_36 = arith.constant dense<0.000000e+00> : vector<1x8x32xf32>
    %94 = tpu.matmul %60, %32, %cst_36 {dimension_numbers = #tpu.dot_dimension_numbers<[2], [0], [0, 1], [1], [0, 0, 0, 1, 1, 1], [], []>} : vector<1x8x32xf32>, vector<32x32xf32>, vector<1x8x32xf32> -> vector<1x8x32xf32>
    "tpu.trace_stop"() : () -> ()
    "tpu.trace_start"() <{level = 10 : i32, message = "bnm,bmh->bnh"}> : () -> ()
    %cst_37 = arith.constant dense<0.000000e+00> : vector<1x8x32xf32>
    %95 = tpu.matmul %93, %94, %cst_37 {dimension_numbers = #tpu.dot_dimension_numbers<[2], [1], [1], [2], [0, 0, 0, 1, 1, 2], [0], [0]>} : vector<1x8x8xf32>, vector<1x8x32xf32>, vector<1x8x32xf32> -> vector<1x8x32xf32>
    "tpu.trace_stop"() : () -> ()
    %96 = vector.shape_cast %44 : vector<32xf32> to vector<1x1x32xf32>
    %97 = vector.broadcast %96 : vector<1x1x32xf32> to vector<1x8x32xf32>
    %98 = arith.addf %95, %97 : vector<1x8x32xf32>
    %cst_38 = arith.constant 0.000000e+00 : f32
    %99 = vector.broadcast %cst_38 : f32 to vector<1x8x32xf32>
    %100 = arith.maximumf %98, %99 : vector<1x8x32xf32>
    %c0_39 = arith.constant 0 : index
    %c0_40 = arith.constant 0 : index
    %c0_41 = arith.constant 0 : index
    %101 = vector.load %arg11[%c0_39, %c0_40, %c0_41] : memref<1x8x32xf32, #tpu.memory_space<vmem>>, vector<1x8x32xf32>
    tpu.vector_store %arg11[%c0_39, %c0_40, %c0_41], %100 {strides = array<i32>} : memref<1x8x32xf32, #tpu.memory_space<vmem>>, vector<1x8x32xf32>,
    "tpu.trace_start"() <{level = 10 : i32, message = "brf,fh->brh"}> : () -> ()
    %cst_42 = arith.constant dense<0.000000e+00> : vector<1x8x32xf32>
    %102 = tpu.matmul %100, %34, %cst_42 {dimension_numbers = #tpu.dot_dimension_numbers<[2], [0], [0, 1], [1], [0, 0, 0, 1, 1, 1], [], []>} : vector<1x8x32xf32>, vector<32x32xf32>, vector<1x8x32xf32> -> vector<1x8x32xf32>
    "tpu.trace_stop"() : () -> ()
    %103 = vector.shape_cast %46 : vector<32xf32> to vector<1x1x32xf32>
    %104 = vector.broadcast %103 : vector<1x1x32xf32> to vector<1x8x32xf32>
    %105 = arith.addf %102, %104 : vector<1x8x32xf32>
    %cst_43 = arith.constant 0.000000e+00 : f32
    %106 = vector.broadcast %cst_43 : f32 to vector<1x8x32xf32>
    %107 = arith.maximumf %105, %106 : vector<1x8x32xf32>
    "tpu.trace_start"() <{level = 10 : i32, message = "brf,fh->brh"}> : () -> ()
    %cst_44 = arith.constant dense<0.000000e+00> : vector<1x8x1xf32>
    %108 = tpu.matmul %107, %38, %cst_44 {dimension_numbers = #tpu.dot_dimension_numbers<[2], [0], [0, 1], [1], [0, 0, 0, 1, 1, 1], [], []>} : vector<1x8x32xf32>, vector<32x1xf32>, vector<1x8x1xf32> -> vector<1x8x1xf32>
    "tpu.trace_stop"() : () -> ()
    %109 = vector.shape_cast %47 : vector<1x1xf32> to vector<1x1x1xf32>
    %110 = vector.broadcast %109 : vector<1x1x1xf32> to vector<1x8x1xf32>
    %111 = arith.addf %108, %110 : vector<1x8x1xf32>
    %112 = tpu.transpose %111, [0, 2, 1] : vector<1x8x1xf32> -> vector<1x1x8xf32>
    %cst_45 = arith.constant dense<0xFF800000> : vector<1x1xf32>
    %113 = vector.multi_reduction <maximumf>, %112, %cst_45 [2] : vector<1x1x8xf32> to vector<1x1xf32>
    %114 = vector.shape_cast %113 : vector<1x1xf32> to vector<1x1x1xf32>
    %115 = vector.broadcast %114 : vector<1x1x1xf32> to vector<1x1x8xf32>
    %116 = arith.subf %112, %115 : vector<1x1x8xf32>
    %117 = math.exp %116 : vector<1x1x8xf32>
    %cst_46 = arith.constant dense<0.000000e+00> : vector<1x1xf32>
    %118 = vector.multi_reduction <add>, %117, %cst_46 [2] : vector<1x1x8xf32> to vector<1x1xf32>
    %119 = vector.shape_cast %118 : vector<1x1xf32> to vector<1x1x1xf32>
    %120 = tpu.reciprocal %119 {approx = true} : vector<1x1x1xf32> -> vector<1x1x1xf32>
    %121 = vector.broadcast %120 : vector<1x1x1xf32> to vector<1x1x8xf32>
    %122 = arith.mulf %117, %121 : vector<1x1x8xf32>
    %c0_47 = arith.constant 0 : index
    %c0_48 = arith.constant 0 : index
    %c0_49 = arith.constant 0 : index
    %123 = vector.load %arg12[%c0_47, %c0_48, %c0_49] : memref<1x1x8xf32, #tpu.memory_space<vmem>>, vector<1x1x8xf32>
    tpu.vector_store %arg12[%c0_47, %c0_48, %c0_49], %122 {strides = array<i32>} : memref<1x1x8xf32, #tpu.memory_space<vmem>>, vector<1x1x8xf32>,
    return
  }
  func.func @transform_0(%arg0: i32) -> (i32, i32, i32) {
    %c0_i32 = arith.constant 0 : i32
    %c0_i32_0 = arith.constant 0 : i32
    %c0_i32_1 = arith.constant 0 : i32
    return %arg0, %c0_i32, %c0_i32_0 : i32, i32, i32
  }
  func.func @transform_1(%arg0: i32) -> (i32, i32, i32) {
    %c0_i32 = arith.constant 0 : i32
    %c0_i32_0 = arith.constant 0 : i32
    %c0_i32_1 = arith.constant 0 : i32
    return %arg0, %c0_i32, %c0_i32_0 : i32, i32, i32
  }
  func.func @transform_2(%arg0: i32) -> (i32, i32) {
    %c0_i32 = arith.constant 0 : i32
    %c0_i32_0 = arith.constant 0 : i32
    %c0_i32_1 = arith.constant 0 : i32
    return %c0_i32, %c0_i32_0 : i32, i32
  }
  func.func @transform_3(%arg0: i32) -> (i32, i32) {
    %c0_i32 = arith.constant 0 : i32
    %c0_i32_0 = arith.constant 0 : i32
    %c0_i32_1 = arith.constant 0 : i32
    return %c0_i32, %c0_i32_0 : i32, i32
  }
  func.func @transform_4(%arg0: i32) -> (i32, i32) {
    %c0_i32 = arith.constant 0 : i32
    %c0_i32_0 = arith.constant 0 : i32
    %c0_i32_1 = arith.constant 0 : i32
    return %c0_i32, %c0_i32_0 : i32, i32
  }
  func.func @transform_5(%arg0: i32) -> (i32, i32) {
    %c0_i32 = arith.constant 0 : i32
    %c0_i32_0 = arith.constant 0 : i32
    %c0_i32_1 = arith.constant 0 : i32
    return %c0_i32, %c0_i32_0 : i32, i32
  }
  func.func @transform_6(%arg0: i32) -> (i32, i32) {
    %c0_i32 = arith.constant 0 : i32
    %c0_i32_0 = arith.constant 0 : i32
    %c0_i32_1 = arith.constant 0 : i32
    return %c0_i32, %c0_i32_0 : i32, i32
  }
  func.func @transform_7(%arg0: i32) -> (i32, i32, i32) {
    %c0_i32 = arith.constant 0 : i32
    %c0_i32_0 = arith.constant 0 : i32
    %c0_i32_1 = arith.constant 0 : i32
    %c0_i32_2 = arith.constant 0 : i32
    return %c0_i32, %c0_i32_0, %c0_i32_1 : i32, i32, i32
  }
  func.func @transform_8(%arg0: i32) -> (i32, i32) {
    %c0_i32 = arith.constant 0 : i32
    %c0_i32_0 = arith.constant 0 : i32
    %c0_i32_1 = arith.constant 0 : i32
    return %c0_i32, %c0_i32_0 : i32, i32
  }
  func.func @transform_9(%arg0: i32) -> (i32, i32) {
    %c0_i32 = arith.constant 0 : i32
    %c0_i32_0 = arith.constant 0 : i32
    %c0_i32_1 = arith.constant 0 : i32
    return %c0_i32, %c0_i32_0 : i32, i32
  }
  func.func @transform_10(%arg0: i32) -> (i32, i32, i32) {
    %c0_i32 = arith.constant 0 : i32
    %c0_i32_0 = arith.constant 0 : i32
    %c0_i32_1 = arith.constant 0 : i32
    return %arg0, %c0_i32, %c0_i32_0 : i32, i32, i32
  }
  func.func @transform_11(%arg0: i32) -> (i32, i32, i32) {
    %c0_i32 = arith.constant 0 : i32
    %c0_i32_0 = arith.constant 0 : i32
    %c0_i32_1 = arith.constant 0 : i32
    return %arg0, %c0_i32, %c0_i32_0 : i32, i32, i32
  }
}

</mosaic_0001>

<llo_original>
// kernel: tpu_custom_call.1
$region0: #{tpu_custom_call.1}
  #allocation0 [shape = 'u32[]', space=smem, size = 0x4, offset = 0x4, fixed_abs, tag = 'smem constant byte address 0x4 - core index']
  #allocation1 [shape = 'u32[144,128]{1,0:T(1,128)}', space=vmem, size = 0x12000, scoped, tag = 'internal scratch']
  %s0 = inlined_call_operand.vmem [shape: bf16[2,8,4], index: 0, kind: input, shape index: {}]
  %s1 = inlined_call_operand.vmem [shape: bf16[2,16,4], index: 1, kind: input, shape index: {}]
  %s2 = inlined_call_operand.vmem [shape: bf16[8,8], index: 2, kind: input, shape index: {}]
  %s3 = inlined_call_operand.vmem [shape: bf16[16,16], index: 3, kind: input, shape index: {}]
  %s4 = inlined_call_operand.vmem [shape: f32[1,8], index: 4, kind: input, shape index: {}]
  %s5 = inlined_call_operand.vmem [shape: f32[1,16], index: 5, kind: input, shape index: {}]
  %s6 = inlined_call_operand.vmem [shape: bf16[8,16], index: 6, kind: input, shape index: {}]
  %s7 = inlined_call_operand.hbm [shape: f32[5,32,32], index: 7, kind: input, shape index: {}]
  %s8 = inlined_call_operand.vmem [shape: f32[32,5], index: 8, kind: input, shape index: {}]
  %s9 = inlined_call_operand.vmem [shape: f32[6,32], index: 9, kind: input, shape index: {}]
  %s10 = inlined_call_operand.hbm [shape: f32[2,8,32], index: 10, kind: output, shape index: {0}]
  %s11 = inlined_call_operand.hbm [shape: f32[2,1,8], index: 11, kind: output, shape index: {1}]
  %12 = xla_tuple %s10, %s11
  %s13 = sld [smem:[#allocation0]]
  $region85: #{tpu_custom_call.1} parent=0
    _
  %s15 = ssub.s32 1, %s13
  %s16 = scalar_select 0, %s15, %s13
  $region1: #{tpu_custom_call.1} parent=0
    #allocation2 [shape = 'u8[81920]{0}', space=vmem, size = 0x14000, scoped, tag = 'input window, operand 7, single buffered']
    #allocation3 [shape = 's32[2]{0}', space=sflag, size = 0x8, scoped, tag = 'scoped memory for tpu_custom_call.1']
    #allocation4 [shape = 's32[2]{0}', space=sflag, size = 0x8, scoped, tag = 'scoped memory for tpu_custom_call.1']
    #allocation5 [shape = 'u8[8192]{0}', space=vmem, size = 0x2000, scoped, tag = 'output window, operand 0']
    #allocation6 [shape = 'u8[1024]{0}', space=vmem, size = 0x400, scoped, tag = 'output window, operand 1']
    #allocation7 [shape = 's32[2]{0}', space=sflag, size = 0x8, scoped, tag = 'scoped memory for tpu_custom_call.1']
    %17 = vsyncpa [#allocation3], 0
    %18 = vsyncpa [#allocation4], 0
    %s19 = scalar_lea.sflag [#allocation4], 1
    %20 = vsyncpa %s19, 0
    %21 = vsyncpa [#allocation7], 0
    %s22 = scalar_lea.sflag [#allocation7], 1
    %23 = vsyncpa %s22, 0
    loop: start=0, step=1, limit=4
    $region2: #{tpu_custom_call.1} parent=1 // loop_pre_header
      _
    $region3: #{tpu_custom_call.1} parent=1 // loop_header
      %s25 = sphi 0, %s29
      %p26 = scmp.ge.s32.totalorder %s25, 4
      %s35 = sphi 0, %s37
      %s38 = sphi 0, %s35
      %s39 = sphi 0, %s38
      %s55 = sphi 0, %s39
      %s61 = sphi 0, %s63
      %s64 = sphi 0, %s61
      %s65 = sphi 0, %s64
      %s81 = sphi 0, %s65
      %s85 = sphi 0, %s85
      %s87 = sphi 0, %s85
      %s88 = sphi 0, %s87
      %s102 = sphi 0, %s88
      %s106 = sphi 0, %s106
      %s108 = sphi 0, %s106
      %s109 = sphi 0, %s108
      %s123 = sphi 0, %s109
      %s127 = sphi 0, %s127
      %s129 = sphi 0, %s127
      %s130 = sphi 0, %s129
      %s144 = sphi 0, %s130
      %s148 = sphi 0, %s148
      %s150 = sphi 0, %s148
      %s151 = sphi 0, %s150
      %s165 = sphi 0, %s151
      %s169 = sphi 0, %s169
      %s171 = sphi 0, %s169
      %s172 = sphi 0, %s171
      %s186 = sphi 0, %s172
      %s190 = sphi 0, %s190
      %s192 = sphi 0, %s190
      %s193 = sphi 0, %s192
      %s207 = sphi 0, %s193
      %s211 = sphi 0, %s211
      %s213 = sphi 0, %s211
      %s214 = sphi 0, %s213
      %s228 = sphi 0, %s214
      %s232 = sphi 0, %s232
      %s234 = sphi 0, %s232
      %s235 = sphi 0, %s234
      %s249 = sphi 0, %s235
      %s255 = sphi 0, %s257
      %s258 = sphi 0, %s255
      %s259 = sphi 0, %s258
      %s275 = sphi 0, %s259
      %s281 = sphi 0, %s283
      %s284 = sphi 0, %s281
      %s285 = sphi 0, %s284
      %s301 = sphi 0, %s285
    $region4: #{tpu_custom_call.1} parent=1 // loop_header_branch
      %28 = sbr.rel (%p26) target = $region8
    $region5: #{tpu_custom_call.1} parent=1 // loop_body
      %s30 = ssub.s32 %s25, 1
      %s31 = ssub.s32 %s25, 2
      %s32 = sadd.s32 %s25, 1
      %s33 = ssub.s32 %s25, %s32
      %p34 = scmp.eq.s32.totalorder %s33, 0
      %s36 = sadd.s32 %s35, 1
      %s37 = scalar_select %p34, %s35, %s36
      %p40 = pneg %p34
      %p41 = scmp.eq.s32.totalorder %s25, 1
      %p42 = por %p40, %p41
      %p43 = scmp.ne.s32.totalorder %s35, %s38
      %p44 = scmp.eq.s32.totalorder %s25, 0
      %p45 = por %p43, %p44
      %p46 = scmp.ne.s32.totalorder %s35, %s38
      %p47 = scmp.eq.s32.totalorder %s30, 1
      %p48 = por %p46, %p47
      %p49 = scmp.ne.s32.totalorder %s38, %s39
      %p50 = scmp.eq.s32.totalorder %s30, 0
      %p51 = por %p49, %p50
      %p52 = scmp.ne.s32.totalorder %s38, %s39
      %p53 = scmp.eq.s32.totalorder %s31, 1
      %p54 = por %p52, %p53
      %p56 = scmp.ne.s32.totalorder %s39, %s55
      %p57 = scmp.eq.s32.totalorder %s31, 0
      %p58 = por %p56, %p57
      %s59 = ssub.s32 %s25, %s32
      %p60 = scmp.eq.s32.totalorder %s59, 0
      %s62 = sadd.s32 %s61, 1
      %s63 = scalar_select %p60, %s61, %s62
      %p66 = pneg %p60
      %p67 = scmp.eq.s32.totalorder %s25, 1
      %p68 = por %p66, %p67
      %p69 = scmp.ne.s32.totalorder %s61, %s64
      %p70 = scmp.eq.s32.totalorder %s25, 0
      %p71 = por %p69, %p70
      %p72 = scmp.ne.s32.totalorder %s61, %s64
      %p73 = scmp.eq.s32.totalorder %s30, 1
      %p74 = por %p72, %p73
      %p75 = scmp.ne.s32.totalorder %s64, %s65
      %p76 = scmp.eq.s32.totalorder %s30, 0
      %p77 = por %p75, %p76
      %p78 = scmp.ne.s32.totalorder %s64, %s65
      %p79 = scmp.eq.s32.totalorder %s31, 1
      %p80 = por %p78, %p79
      %p82 = scmp.ne.s32.totalorder %s65, %s81
      %p83 = scmp.eq.s32.totalorder %s31, 0
      %p84 = por %p82, %p83
      %s86 = sadd.s32 %s85, 1
      %p89 = scmp.eq.s32.totalorder %s25, 1
      %p90 = scmp.ne.s32.totalorder %s85, %s87
      %p91 = scmp.eq.s32.totalorder %s25, 0
      %p92 = por %p90, %p91
      %p93 = scmp.ne.s32.totalorder %s85, %s87
      %p94 = scmp.eq.s32.totalorder %s30, 1
      %p95 = por %p93, %p94
      %p96 = scmp.ne.s32.totalorder %s87, %s88
      %p97 = scmp.eq.s32.totalorder %s30, 0
      %p98 = por %p96, %p97
      %p99 = scmp.ne.s32.totalorder %s87, %s88
      %p100 = scmp.eq.s32.totalorder %s31, 1
      %p101 = por %p99, %p100
      %p103 = scmp.ne.s32.totalorder %s88, %s102
      %p104 = scmp.eq.s32.totalorder %s31, 0
      %p105 = por %p103, %p104
      %s107 = sadd.s32 %s106, 1
      %p110 = scmp.eq.s32.totalorder %s25, 1
      %p111 = scmp.ne.s32.totalorder %s106, %s108
      %p112 = scmp.eq.s32.totalorder %s25, 0
      %p113 = por %p111, %p112
      %p114 = scmp.ne.s32.totalorder %s106, %s108
      %p115 = scmp.eq.s32.totalorder %s30, 1
      %p116 = por %p114, %p115
      %p117 = scmp.ne.s32.totalorder %s108, %s109
      %p118 = scmp.eq.s32.totalorder %s30, 0
      %p119 = por %p117, %p118
      %p120 = scmp.ne.s32.totalorder %s108, %s109
      %p121 = scmp.eq.s32.totalorder %s31, 1
      %p122 = por %p120, %p121
      %p124 = scmp.ne.s32.totalorder %s109, %s123
      %p125 = scmp.eq.s32.totalorder %s31, 0
      %p126 = por %p124, %p125
      %s128 = sadd.s32 %s127, 1
      %p131 = scmp.eq.s32.totalorder %s25, 1
      %p132 = scmp.ne.s32.totalorder %s127, %s129
      %p133 = scmp.eq.s32.totalorder %s25, 0
      %p134 = por %p132, %p133
      %p135 = scmp.ne.s32.totalorder %s127, %s129
      %p136 = scmp.eq.s32.totalorder %s30, 1
      %p137 = por %p135, %p136
      %p138 = scmp.ne.s32.totalorder %s129, %s130
      %p139 = scmp.eq.s32.totalorder %s30, 0
      %p140 = por %p138, %p139
      %p141 = scmp.ne.s32.totalorder %s129, %s130
      %p142 = scmp.eq.s32.totalorder %s31, 1
      %p143 = por %p141, %p142
      %p145 = scmp.ne.s32.totalorder %s130, %s144
      %p146 = scmp.eq.s32.totalorder %s31, 0
      %p147 = por %p145, %p146
      %s149 = sadd.s32 %s148, 1
      %p152 = scmp.eq.s32.totalorder %s25, 1
      %p153 = scmp.ne.s32.totalorder %s148, %s150
      %p154 = scmp.eq.s32.totalorder %s25, 0
      %p155 = por %p153, %p154
      %p156 = scmp.ne.s32.totalorder %s148, %s150
      %p157 = scmp.eq.s32.totalorder %s30, 1
      %p158 = por %p156, %p157
      %p159 = scmp.ne.s32.totalorder %s150, %s151
      %p160 = scmp.eq.s32.totalorder %s30, 0
      %p161 = por %p159, %p160
      %p162 = scmp.ne.s32.totalorder %s150, %s151
      %p163 = scmp.eq.s32.totalorder %s31, 1
      %p164 = por %p162, %p163
      %p166 = scmp.ne.s32.totalorder %s151, %s165
      %p167 = scmp.eq.s32.totalorder %s31, 0
      %p168 = por %p166, %p167
      %s170 = sadd.s32 %s169, 1
      %p173 = scmp.eq.s32.totalorder %s25, 1
      %p174 = scmp.ne.s32.totalorder %s169, %s171
      %p175 = scmp.eq.s32.totalorder %s25, 0
      %p176 = por %p174, %p175
      %p177 = scmp.ne.s32.totalorder %s169, %s171
      %p178 = scmp.eq.s32.totalorder %s30, 1
      %p179 = por %p177, %p178
      %p180 = scmp.ne.s32.totalorder %s171, %s172
      %p181 = scmp.eq.s32.totalorder %s30, 0
      %p182 = por %p180, %p181
      %p183 = scmp.ne.s32.totalorder %s171, %s172
      %p184 = scmp.eq.s32.totalorder %s31, 1
      %p185 = por %p183, %p184
      %p187 = scmp.ne.s32.totalorder %s172, %s186
      %p188 = scmp.eq.s32.totalorder %s31, 0
      %p189 = por %p187, %p188
      %s191 = sadd.s32 %s190, 1
      %p194 = scmp.eq.s32.totalorder %s25, 1
      %p195 = scmp.ne.s32.totalorder %s190, %s192
      %p196 = scmp.eq.s32.totalorder %s25, 0
      %p197 = por %p195, %p196
      %p198 = scmp.ne.s32.totalorder %s190, %s192
      %p199 = scmp.eq.s32.totalorder %s30, 1
      %p200 = por %p198, %p199
      %p201 = scmp.ne.s32.totalorder %s192, %s193
      %p202 = scmp.eq.s32.totalorder %s30, 0
      %p203 = por %p201, %p202
      %p204 = scmp.ne.s32.totalorder %s192, %s193
      %p205 = scmp.eq.s32.totalorder %s31, 1
      %p206 = por %p204, %p205
      %p208 = scmp.ne.s32.totalorder %s193, %s207
      %p209 = scmp.eq.s32.totalorder %s31, 0
      %p210 = por %p208, %p209
      %s212 = sadd.s32 %s211, 1
      %p215 = scmp.eq.s32.totalorder %s25, 1
      %p216 = scmp.ne.s32.totalorder %s211, %s213
      %p217 = scmp.eq.s32.totalorder %s25, 0
      %p218 = por %p216, %p217
      %p219 = scmp.ne.s32.totalorder %s211, %s213
      %p220 = scmp.eq.s32.totalorder %s30, 1
      %p221 = por %p219, %p220
      %p222 = scmp.ne.s32.totalorder %s213, %s214
      %p223 = scmp.eq.s32.totalorder %s30, 0
      %p224 = por %p222, %p223
      %p225 = scmp.ne.s32.totalorder %s213, %s214
      %p226 = scmp.eq.s32.totalorder %s31, 1
      %p227 = por %p225, %p226
      %p229 = scmp.ne.s32.totalorder %s214, %s228
      %p230 = scmp.eq.s32.totalorder %s31, 0
      %p231 = por %p229, %p230
      %s233 = sadd.s32 %s232, 1
      %p236 = scmp.eq.s32.totalorder %s25, 1
      %p237 = scmp.ne.s32.totalorder %s232, %s234
      %p238 = scmp.eq.s32.totalorder %s25, 0
      %p239 = por %p237, %p238
      %p240 = scmp.ne.s32.totalorder %s232, %s234
      %p241 = scmp.eq.s32.totalorder %s30, 1
      %p242 = por %p240, %p241
      %p243 = scmp.ne.s32.totalorder %s234, %s235
      %p244 = scmp.eq.s32.totalorder %s30, 0
      %p245 = por %p243, %p244
      %p246 = scmp.ne.s32.totalorder %s234, %s235
      %p247 = scmp.eq.s32.totalorder %s31, 1
      %p248 = por %p246, %p247
      %p250 = scmp.ne.s32.totalorder %s235, %s249
      %p251 = scmp.eq.s32.totalorder %s31, 0
      %p252 = por %p250, %p251
      %s253 = ssub.s32 %s25, %s32
      %p254 = scmp.eq.s32.totalorder %s253, 0
      %s256 = sadd.s32 %s255, 1
      %s257 = scalar_select %p254, %s255, %s256
      %p260 = pneg %p254
      %p261 = scmp.eq.s32.totalorder %s25, 1
      %p262 = por %p260, %p261
      %p263 = scmp.ne.s32.totalorder %s255, %s258
      %p264 = scmp.eq.s32.totalorder %s25, 0
      %p265 = por %p263, %p264
      %p266 = scmp.ne.s32.totalorder %s255, %s258
      %p267 = scmp.eq.s32.totalorder %s30, 1
      %p268 = por %p266, %p267
      %p269 = scmp.ne.s32.totalorder %s258, %s259
      %p270 = scmp.eq.s32.totalorder %s30, 0
      %p271 = por %p269, %p270
      %p272 = scmp.ne.s32.totalorder %s258, %s259
      %p273 = scmp.eq.s32.totalorder %s31, 1
      %p274 = por %p272, %p273
      %p276 = scmp.ne.s32.totalorder %s259, %s275
      %p277 = scmp.eq.s32.totalorder %s31, 0
      %p278 = por %p276, %p277
      %s279 = ssub.s32 %s25, %s32
      %p280 = scmp.eq.s32.totalorder %s279, 0
      %s282 = sadd.s32 %s281, 1
      %s283 = scalar_select %p280, %s281, %s282
      %p286 = pneg %p280
      %p287 = scmp.eq.s32.totalorder %s25, 1
      %p288 = por %p286, %p287
      %p289 = scmp.ne.s32.totalorder %s281, %s284
      %p290 = scmp.eq.s32.totalorder %s25, 0
      %p291 = por %p289, %p290
      %p292 = scmp.ne.s32.totalorder %s281, %s284
      %p293 = scmp.eq.s32.totalorder %s30, 1
      %p294 = por %p292, %p293
      %p295 = scmp.ne.s32.totalorder %s284, %s285
      %p296 = scmp.eq.s32.totalorder %s30, 0
      %p297 = por %p295, %p296
      %p298 = scmp.ne.s32.totalorder %s284, %s285
      %p299 = scmp.eq.s32.totalorder %s31, 1
      %p300 = por %p298, %p299
      %p302 = scmp.ne.s32.totalorder %s285, %s301
      %p303 = scmp.eq.s32.totalorder %s31, 0
      %p304 = por %p302, %p303
      %p305 = scmp.le.s32.totalorder 1, %s25
      %p306 = scmp.lt.s32.totalorder %s25, 3
      %p307 = pnand %p305, %p306
      %p308 = pneg %p307
      // Predicated region
      $region9: #{tpu_custom_call.1} parent=5 // pred_check
        _
      $region10: #{tpu_custom_call.1} parent=5 // pred_check_branch
        %310 = sbr.rel (%p307) target = $region12
      $region11: #{tpu_custom_call.1} parent=5 // pred_region
        %s311 = ssub.s32 %s25, 1
        // Predicated region
        $region13: #{tpu_custom_call.1} parent=11 // pred_check
          %p312 = pneg %p98
        $region14: #{tpu_custom_call.1} parent=11 // pred_check_branch
          %314 = sbr.rel (%p312) target = $region16
        $region15: #{tpu_custom_call.1} parent=11 // pred_region
          _
        $region16: #{tpu_custom_call.1} parent=11 // pred_fallthru
          _
        // Predicated region
        $region17: #{tpu_custom_call.1} parent=11 // pred_check
          %p315 = pneg %p119
        $region18: #{tpu_custom_call.1} parent=11 // pred_check_branch
          %317 = sbr.rel (%p315) target = $region20
        $region19: #{tpu_custom_call.1} parent=11 // pred_region
          _
        $region20: #{tpu_custom_call.1} parent=11 // pred_fallthru
          _
        // Predicated region
        $region21: #{tpu_custom_call.1} parent=11 // pred_check
          %p318 = pneg %p140
        $region22: #{tpu_custom_call.1} parent=11 // pred_check_branch
          %320 = sbr.rel (%p318) target = $region24
        $region23: #{tpu_custom_call.1} parent=11 // pred_region
          _
        $region24: #{tpu_custom_call.1} parent=11 // pred_fallthru
          _
        // Predicated region
        $region25: #{tpu_custom_call.1} parent=11 // pred_check
          %p321 = pneg %p161
        $region26: #{tpu_custom_call.1} parent=11 // pred_check_branch
          %323 = sbr.rel (%p321) target = $region28
        $region27: #{tpu_custom_call.1} parent=11 // pred_region
          _
        $region28: #{tpu_custom_call.1} parent=11 // pred_fallthru
          _
        // Predicated region
        $region29: #{tpu_custom_call.1} parent=11 // pred_check
          %p324 = pneg %p182
        $region30: #{tpu_custom_call.1} parent=11 // pred_check_branch
          %326 = sbr.rel (%p324) target = $region32
        $region31: #{tpu_custom_call.1} parent=11 // pred_region
          _
        $region32: #{tpu_custom_call.1} parent=11 // pred_fallthru
          _
        // Predicated region
        $region33: #{tpu_custom_call.1} parent=11 // pred_check
          %p327 = pneg %p203
        $region34: #{tpu_custom_call.1} parent=11 // pred_check_branch
          %329 = sbr.rel (%p327) target = $region36
        $region35: #{tpu_custom_call.1} parent=11 // pred_region
          %s331 = ssub.s32 2560, 2560
          %332 = vsyncadd [#allocation3], %s331
          %s333 = sshll.u32 [#allocation2], 4
          %s334 = int_to_ptr.vmem [resolvable:$true] %s333
          %339 = dma.hbm_to_vmem [thread:$0]  %s7, 2560, %s334, [#allocation3], 128, 128, 8
        $region36: #{tpu_custom_call.1} parent=11 // pred_fallthru
          _
        // Predicated region
        $region37: #{tpu_custom_call.1} parent=11 // pred_check
          %p340 = pneg %p224
        $region38: #{tpu_custom_call.1} parent=11 // pred_check_branch
          %342 = sbr.rel (%p340) target = $region40
        $region39: #{tpu_custom_call.1} parent=11 // pred_region
          _
        $region40: #{tpu_custom_call.1} parent=11 // pred_fallthru
          _
        // Predicated region
        $region41: #{tpu_custom_call.1} parent=11 // pred_check
          %p343 = pneg %p245
        $region42: #{tpu_custom_call.1} parent=11 // pred_check_branch
          %345 = sbr.rel (%p343) target = $region44
        $region43: #{tpu_custom_call.1} parent=11 // pred_region
          _
        $region44: #{tpu_custom_call.1} parent=11 // pred_fallthru
          _
      $region12: #{tpu_custom_call.1} parent=5 // pred_fallthru
        _
      %p346 = scmp.lt.s32.totalorder %s25, 2
      // Predicated region
      $region45: #{tpu_custom_call.1} parent=5 // pred_check
        %p347 = pneg %p346
      $region46: #{tpu_custom_call.1} parent=5 // pred_check_branch
        %349 = sbr.rel (%p347) target = $region48
      $region47: #{tpu_custom_call.1} parent=5 // pred_region
        // Predicated region
        $region49: #{tpu_custom_call.1} parent=47 // pred_check
          %p350 = pneg %p45
        $region50: #{tpu_custom_call.1} parent=47 // pred_check_branch
          %352 = sbr.rel (%p350) target = $region52
        $region51: #{tpu_custom_call.1} parent=47 // pred_region
          %p353 = scmp.lt.s32.totalorder %s25, 1
          %s354 = scalar_select %p353, %s25, 1
          %s355 = smul.addr %s354, 4
          %s356 = scalar_lea.vmem %s0, %s355
        $region52: #{tpu_custom_call.1} parent=47 // pred_fallthru
          _
        // Predicated region
        $region53: #{tpu_custom_call.1} parent=47 // pred_check
          %p357 = pneg %p71
        $region54: #{tpu_custom_call.1} parent=47 // pred_check_branch
          %359 = sbr.rel (%p357) target = $region56
        $region55: #{tpu_custom_call.1} parent=47 // pred_region
          %p360 = scmp.lt.s32.totalorder %s25, 1
          %s361 = scalar_select %p360, %s25, 1
          %s362 = smul.addr %s361, 2
          %s363 = smul.addr %s362, 4
          %s364 = scalar_lea.vmem %s1, %s363
        $region56: #{tpu_custom_call.1} parent=47 // pred_fallthru
          _
      $region48: #{tpu_custom_call.1} parent=5 // pred_fallthru
        _
      %p365 = scmp.le.s32.totalorder 1, %s25
      %p366 = scmp.lt.s32.totalorder %s25, 3
      %p367 = pnand %p365, %p366
      %p368 = pneg %p367
      // Predicated region
      $region57: #{tpu_custom_call.1} parent=5 // pred_check
        _
      $region58: #{tpu_custom_call.1} parent=5 // pred_check_branch
        %370 = sbr.rel (%p367) target = $region60
      $region59: #{tpu_custom_call.1} parent=5 // pred_region
        %s371 = ssub.s32 %s25, 1
        // Predicated region
        $region61: #{tpu_custom_call.1} parent=59 // pred_check
          %p372 = pneg %p203
        $region62: #{tpu_custom_call.1} parent=59 // pred_check_branch
          %374 = sbr.rel (%p372) target = $region64
        $region63: #{tpu_custom_call.1} parent=59 // pred_region
          %375 = dma.done [#allocation3], 2560
        $region64: #{tpu_custom_call.1} parent=59 // pred_fallthru
          _
        %p376 = scmp.lt.s32.totalorder %s30, 1
        %s377 = scalar_select %p376, %s30, 1
        %s378 = smul.addr %s377, 4
        %s379 = scalar_lea.vmem %s0, %s378
        %p380 = pneg %p51
        %p381 = pneg %p48
        %p382 = scmp.lt.s32.totalorder %s30, 1
        %s383 = scalar_select %p382, %s30, 1
        %s384 = smul.addr %s383, 2
        %s385 = smul.addr %s384, 4
        %s386 = scalar_lea.vmem %s1, %s385
        %p387 = pneg %p77
        %p388 = pneg %p74
        %p389 = pneg %p98
        %p390 = pneg %p95
        %p391 = pneg %p119
        %p392 = pneg %p116
        %p393 = pneg %p140
        %p394 = pneg %p137
        %p395 = pneg %p161
        %p396 = pneg %p158
        %p397 = pneg %p182
        %p398 = pneg %p179
        %p399 = pneg %p203
        %p400 = pneg %p200
        %p401 = pneg %p224
        %p402 = pneg %p221
        %p403 = pneg %p245
        %p404 = pneg %p242
        %p405 = pneg %p271
        %p406 = pneg %p268
        %s407 = sand.u32 %s258, 1
        %s408 = scalar_lea.sflag [#allocation4], %s407
        %s409 = sand.u32 %s258, 1
        %s410 = smul.addr %s409, 8
        %s411 = scalar_lea.vmem [#allocation5], %s410
        %p412 = pneg %p297
        %p413 = pneg %p294
        %s414 = sand.u32 %s284, 1
        %s415 = scalar_lea.sflag [#allocation7], %s414
        %s416 = sand.u32 %s284, 1
        %s417 = scalar_lea.vmem [#allocation6], %s416
        %p418 = scmp.lt.s32.totalorder %s30, 1
        %s419 = scalar_select %p418, %s30, 1
        %s420 = smul.addr %s419, 4
        %s421 = scalar_lea.vmem %s0, %s420
        %p422 = scmp.lt.s32.totalorder %s30, 1
        %s423 = scalar_select %p422, %s30, 1
        %s424 = smul.addr %s423, 2
        %s425 = smul.addr %s424, 4
        %s426 = scalar_lea.vmem %s1, %s425
        %v427 = vld [vmem:[%s421] sm:$0xf]
        %v428 = vunpack.c.l.bf16 %v427
        %v429 = vld [vmem:[%s426] sm:$0xf]
        %v430 = vld [vmem:[%s426 + $0x4] sm:$0xf]
        %v431 = vunpack.c.l.bf16 %v429
        %v432 = vunpack.c.l.bf16 %v430
        %v433 = vld [vmem:[%s4] sm:$0x1]
        %v434 = vld [vmem:[%s5] sm:$0x1]
        %v435 = vld [vmem:[%s6] sm:$0xf]
        %v436 = vunpack.c.l.bf16 %v435
        %437 = vxpose.xlu0.b32.start [1/16] %v436, 128
        %438 = vxpose.xlu0.b32.cont [2/16] 0.0, 128
        %439 = vxpose.xlu0.b32.cont [3/16] 0.0, 128
        %440 = vxpose.xlu0.b32.cont [4/16] 0.0, 128
        %441 = vxpose.xlu0.b32.cont [5/16] 0.0, 128
        %442 = vxpose.xlu0.b32.cont [6/16] 0.0, 128
        %443 = vxpose.xlu0.b32.cont [7/16] 0.0, 128
        %444 = vxpose.xlu0.b32.cont [8/16] 0.0, 128
        %445 = vxpose.xlu0.b32.cont [9/16] 0.0, 128
        %446 = vxpose.xlu0.b32.cont [10/16] 0.0, 128
        %447 = vxpose.xlu0.b32.cont [11/16] 0.0, 128
        %448 = vxpose.xlu0.b32.cont [12/16] 0.0, 128
        %449 = vxpose.xlu0.b32.cont [13/16] 0.0, 128
        %450 = vxpose.xlu0.b32.cont [14/16] 0.0, 128
        %451 = vxpose.xlu0.b32.cont [15/16] 0.0, 128
        %452 = vxpose.xlu0.b32.end [16/16] 0.0, 128
        %v453 = vpop.trf.xlu0
        %v454 = vpop.trf.xlu0
        %v455 = vpop.trf.xlu0
        %v456 = vpop.trf.xlu0
        %v457 = vpop.trf.xlu0
        %v458 = vpop.trf.xlu0
        %v459 = vpop.trf.xlu0
        %v460 = vpop.trf.xlu0
        %v461 = vpop.trf.xlu0
        %v462 = vpop.trf.xlu0
        %v463 = vpop.trf.xlu0
        %v464 = vpop.trf.xlu0
        %v465 = vpop.trf.xlu0
        %v466 = vpop.trf.xlu0
        %v467 = vpop.trf.xlu0
        %v468 = vpop.trf.xlu0
        %v469 = vld [vmem:[%s2] sm:$0xf]
        %v470 = vunpack.c.l.bf16 %v469
        %471 = vxpose.xlu0.b32.start [1/16] %v433, 128
        %472 = vxpose.xlu0.b32.cont [2/16] 0.0, 128
        %473 = vxpose.xlu0.b32.cont [3/16] 0.0, 128
        %474 = vxpose.xlu0.b32.cont [4/16] 0.0, 128
        %475 = vxpose.xlu0.b32.cont [5/16] 0.0, 128
        %476 = vxpose.xlu0.b32.cont [6/16] 0.0, 128
        %477 = vxpose.xlu0.b32.cont [7/16] 0.0, 128
        %478 = vxpose.xlu0.b32.cont [8/16] 0.0, 128
        %479 = vxpose.xlu0.b32.cont [9/16] 0.0, 128
        %480 = vxpose.xlu0.b32.cont [10/16] 0.0, 128
        %481 = vxpose.xlu0.b32.cont [11/16] 0.0, 128
        %482 = vxpose.xlu0.b32.cont [12/16] 0.0, 128
        %483 = vxpose.xlu0.b32.cont [13/16] 0.0, 128
        %484 = vxpose.xlu0.b32.cont [14/16] 0.0, 128
        %485 = vxpose.xlu0.b32.cont [15/16] 0.0, 128
        %486 = vxpose.xlu0.b32.end [16/16] 0.0, 128
        %v487 = vpop.trf.xlu0
        %v488 = vpop.trf.xlu0
        %v489 = vpop.trf.xlu0
        %v490 = vpop.trf.xlu0
        %v491 = vpop.trf.xlu0
        %v492 = vpop.trf.xlu0
        %v493 = vpop.trf.xlu0
        %v494 = vpop.trf.xlu0
        %v495 = vpop.trf.xlu0
        %v496 = vpop.trf.xlu0
        %v497 = vpop.trf.xlu0
        %v498 = vpop.trf.xlu0
        %v499 = vpop.trf.xlu0
        %v500 = vpop.trf.xlu0
        %v501 = vpop.trf.xlu0
        %v502 = vpop.trf.xlu0
        %504 = vset.pattern.permute.xlu0 0
        %505 = vperm.xlu0 %504, %v487
        %v506 = vpop.permute.xlu0 %505
        %v508 = vmul.f32 %v470, %v506
        %v510 = vlaneseq
        %v511 = vshrl.u32 %v510, 7
        %v512 = vsub.s32 0, %v511
        %v513 = vrot.slane %v433, %v512
        %v515 = vmul.f32 %v508, %v513
        %v516 = vld [vmem:[%s3] sm:$0xf]
        %v517 = vld [vmem:[%s3 + $0x4] sm:$0xf]
        %v518 = vunpack.c.l.bf16 %v516
        %v519 = vunpack.c.l.bf16 %v517
        %520 = vxpose.xlu0.b32.start [1/16] %v434, 128
        %521 = vxpose.xlu0.b32.cont [2/16] 0.0, 128
        %522 = vxpose.xlu0.b32.cont [3/16] 0.0, 128
        %523 = vxpose.xlu0.b32.cont [4/16] 0.0, 128
        %524 = vxpose.xlu0.b32.cont [5/16] 0.0, 128
        %525 = vxpose.xlu0.b32.cont [6/16] 0.0, 128
        %526 = vxpose.xlu0.b32.cont [7/16] 0.0, 128
        %527 = vxpose.xlu0.b32.cont [8/16] 0.0, 128
        %528 = vxpose.xlu0.b32.cont [9/16] 0.0, 128
        %529 = vxpose.xlu0.b32.cont [10/16] 0.0, 128
        %530 = vxpose.xlu0.b32.cont [11/16] 0.0, 128
        %531 = vxpose.xlu0.b32.cont [12/16] 0.0, 128
        %532 = vxpose.xlu0.b32.cont [13/16] 0.0, 128
        %533 = vxpose.xlu0.b32.cont [14/16] 0.0, 128
        %534 = vxpose.xlu0.b32.cont [15/16] 0.0, 128
        %535 = vxpose.xlu0.b32.end [16/16] 0.0, 128
        %v536 = vpop.trf.xlu0
        %v537 = vpop.trf.xlu0
        %v538 = vpop.trf.xlu0
        %v539 = vpop.trf.xlu0
        %v540 = vpop.trf.xlu0
        %v541 = vpop.trf.xlu0
        %v542 = vpop.trf.xlu0
        %v543 = vpop.trf.xlu0
        %v544 = vpop.trf.xlu0
        %v545 = vpop.trf.xlu0
        %v546 = vpop.trf.xlu0
        %v547 = vpop.trf.xlu0
        %v548 = vpop.trf.xlu0
        %v549 = vpop.trf.xlu0
        %v550 = vpop.trf.xlu0
        %v551 = vpop.trf.xlu0
        %553 = vset.pattern.permute.xlu0 0
        %554 = vperm.xlu0 %553, %v536
        %v555 = vpop.permute.xlu0 %554
        %558 = vset.pattern.permute.xlu0 0
        %559 = vperm.xlu0 %558, %v537
        %v560 = vpop.permute.xlu0 %559
        %v562 = vmul.f32 %v518, %v555
        %v563 = vmul.f32 %v519, %v560
        %v565 = vlaneseq
        %v566 = vshrl.u32 %v565, 7
        %v567 = vsub.s32 0, %v566
        %v568 = vrot.slane %v434, %v567
        %v570 = vmul.f32 %v562, %v568
        %v571 = vmul.f32 %v563, %v568
        %v572 = vld [vmem:[#allocation2] sm:$0xff]
        %v573 = vld [vmem:[#allocation2 + $0x20] sm:$0xff]
        %v574 = vld [vmem:[#allocation2 + $0x40] sm:$0xff]
        %v575 = vld [vmem:[#allocation2 + $0x48] sm:$0xff]
        %v576 = vld [vmem:[#allocation2 + $0x50] sm:$0xff]
        %v577 = vld [vmem:[#allocation2 + $0x58] sm:$0xff]
        %v578 = vld [vmem:[#allocation2 + $0x80] sm:$0xff]
        %v579 = vld [vmem:[#allocation2 + $0x88] sm:$0xff]
        %v580 = vld [vmem:[#allocation2 + $0x90] sm:$0xff]
        %v581 = vld [vmem:[#allocation2 + $0x98] sm:$0xff]
        %v582 = vld [vmem:[%s8] sm:$0xff]
        %v583 = vld [vmem:[%s8 + $0x8] sm:$0xff]
        %v584 = vld [vmem:[%s8 + $0x10] sm:$0xff]
        %v585 = vld [vmem:[%s8 + $0x18] sm:$0xff]
        %v586 = vld [vmem:[%s9] sm:$0x3f]
        %vm587 = vcmask 31744
        %v589 = vsel %vm587, %v431, 0
        %v592 = vsel %vm587, %v432, 0
        %vm594 = vcmask 1043456
        %v596 = vsel %vm594, %v582, 0
        %598 = vmatprep.subr.mxu0 0.0
        %599 = vmatpush1.msra.mxu0 %v596
        %600 = vmatprep.subr.mxu0 0.0
        %601 = vmatpush1.msra.mxu0 0.0
        %602 = vmatprep.subr.mxu0 0.0
        %603 = vmatpush1.msra.mxu0 0.0
        %604 = vmatprep.subr.mxu0 0.0
        %605 = vmatpush1.msra.mxu0 0.0
        %606 = vmatprep.subr.mxu0 0.0
        %607 = vmatpush1.msra.mxu0 0.0
        %608 = vmatprep.subr.mxu0 0.0
        %609 = vmatpush1.msra.mxu0 0.0
        %610 = vmatprep.subr.mxu0 0.0
        %611 = vmatpush1.msra.mxu0 0.0
        %612 = vmatprep.subr.mxu0 0.0
        %613 = vmatpush1.msra.mxu0 0.0
        %614 = vmatprep.subr.mxu0 0.0
        %615 = vmatpush1.msra.mxu0 0.0
        %616 = vmatprep.subr.mxu0 0.0
        %617 = vmatpush1.msra.mxu0 0.0
        %618 = vmatprep.subr.mxu0 0.0
        %619 = vmatpush1.msra.mxu0 0.0
        %620 = vmatprep.subr.mxu0 0.0
        %621 = vmatpush1.msra.mxu0 0.0
        %622 = vmatprep.subr.mxu0 0.0
        %623 = vmatpush1.msra.mxu0 0.0
        %624 = vmatprep.subr.mxu0 0.0
        %625 = vmatpush1.msra.mxu0 0.0
        %626 = vmatprep.subr.mxu0 0.0
        %627 = vmatpush1.msra.mxu0 0.0
        %628 = vmatprep.subr.mxu0 0.0
        %629 = vmatpush1.msra.mxu0 0.0
        %630 = vmatprep.subr.mxu0 0.0
        %631 = vmatpush1.msra.mxu0 0.0
        %632 = vmatprep.subr.mxu0 0.0
        %633 = vmatpush1.msra.mxu0 0.0
        %634 = vmatprep.subr.mxu0 0.0
        %635 = vmatpush1.msra.mxu0 0.0
        %636 = vmatprep.subr.mxu0 0.0
        %637 = vmatpush1.msra.mxu0 0.0
        %638 = vmatprep.subr.mxu0 0.0
        %639 = vmatpush1.msra.mxu0 0.0
        %640 = vmatprep.subr.mxu0 0.0
        %641 = vmatpush1.msra.mxu0 0.0
        %642 = vmatprep.subr.mxu0 0.0
        %643 = vmatpush1.msra.mxu0 0.0
        %644 = vmatprep.subr.mxu0 0.0
        %645 = vmatpush1.msra.mxu0 0.0
        %646 = vmatprep.subr.mxu0 0.0
        %647 = vmatpush1.msra.mxu0 0.0
        %648 = vmatprep.subr.mxu0 0.0
        %649 = vmatpush1.msra.mxu0 0.0
        %650 = vmatprep.subr.mxu0 0.0
        %651 = vmatpush1.msra.mxu0 0.0
        %652 = vmatprep.subr.mxu0 0.0
        %653 = vmatpush1.msra.mxu0 0.0
        %654 = vmatprep.subr.mxu0 0.0
        %655 = vmatpush1.msra.mxu0 0.0
        %656 = vmatprep.subr.mxu0 0.0
        %657 = vmatpush1.msra.mxu0 0.0
        %658 = vmatprep.subr.mxu0 0.0
        %659 = vmatpush1.msra.mxu0 0.0
        %660 = vmatprep.subr.mxu0 0.0
        %661 = vmatpush1.msra.mxu0 0.0
        %662 = vmatprep.mubr.f32.mxu0 0.0
        %663 = vmatmul.mubr.f32.gmra.mrb[0].mxu0 %v589
        %v664 = vpop.f32.mrb[0].mxu0
        %v665 = vadd.f32 0.0, %v664
        %v666 = vpop.f32.mrb[0].mxu0
        %667 = vmatprep.mubr.f32.mxu0 0.0
        %668 = vmatmul.mubr.f32.gmra.mrb[0].mxu0 %v592
        %v669 = vpop.f32.mrb[0].mxu0
        %v670 = vadd.f32 0.0, %v669
        %v671 = vpop.f32.mrb[0].mxu0
        %672 = vdwg.mxu0
        %674 = vset.pattern.permute.xlu0 0
        %675 = vperm.xlu0 %674, %v665
        %v676 = vpop.permute.xlu0 %675
        %679 = vset.pattern.permute.xlu0 0
        %680 = vperm.xlu0 %679, %v670
        %v681 = vpop.permute.xlu0 %680
        %v683 = vmul.f32 %v453, %v676
        %v684 = vmul.f32 %v454, %v681
        %vm685 = vcmask 130048
        %v687 = vsel %vm685, %v436, 0
        %689 = vmatprep.subr.mxu0 0.0
        %690 = vmatpush1.msra.mxu0 %v683
        %691 = vmatprep.subr.mxu0 0.0
        %692 = vmatpush1.msra.mxu0 %v684
        %693 = vmatprep.subr.mxu0 0.0
        %694 = vmatpush1.msra.mxu0 0.0
        %695 = vmatprep.subr.mxu0 0.0
        %696 = vmatpush1.msra.mxu0 0.0
        %697 = vmatprep.subr.mxu0 0.0
        %698 = vmatpush1.msra.mxu0 0.0
        %699 = vmatprep.subr.mxu0 0.0
        %700 = vmatpush1.msra.mxu0 0.0
        %701 = vmatprep.subr.mxu0 0.0
        %702 = vmatpush1.msra.mxu0 0.0
        %703 = vmatprep.subr.mxu0 0.0
        %704 = vmatpush1.msra.mxu0 0.0
        %705 = vmatprep.subr.mxu0 0.0
        %706 = vmatpush1.msra.mxu0 0.0
        %707 = vmatprep.subr.mxu0 0.0
        %708 = vmatpush1.msra.mxu0 0.0
        %709 = vmatprep.subr.mxu0 0.0
        %710 = vmatpush1.msra.mxu0 0.0
        %711 = vmatprep.subr.mxu0 0.0
        %712 = vmatpush1.msra.mxu0 0.0
        %713 = vmatprep.subr.mxu0 0.0
        %714 = vmatpush1.msra.mxu0 0.0
        %715 = vmatprep.subr.mxu0 0.0
        %716 = vmatpush1.msra.mxu0 0.0
        %717 = vmatprep.subr.mxu0 0.0
        %718 = vmatpush1.msra.mxu0 0.0
        %719 = vmatprep.subr.mxu0 0.0
        %720 = vmatpush1.msra.mxu0 0.0
        %721 = vmatprep.subr.mxu0 0.0
        %722 = vmatpush1.msra.mxu0 0.0
        %723 = vmatprep.subr.mxu0 0.0
        %724 = vmatpush1.msra.mxu0 0.0
        %725 = vmatprep.subr.mxu0 0.0
        %726 = vmatpush1.msra.mxu0 0.0
        %727 = vmatprep.subr.mxu0 0.0
        %728 = vmatpush1.msra.mxu0 0.0
        %729 = vmatprep.subr.mxu0 0.0
        %730 = vmatpush1.msra.mxu0 0.0
        %731 = vmatprep.subr.mxu0 0.0
        %732 = vmatpush1.msra.mxu0 0.0
        %733 = vmatprep.subr.mxu0 0.0
        %734 = vmatpush1.msra.mxu0 0.0
        %735 = vmatprep.subr.mxu0 0.0
        %736 = vmatpush1.msra.mxu0 0.0
        %737 = vmatprep.subr.mxu0 0.0
        %738 = vmatpush1.msra.mxu0 0.0
        %739 = vmatprep.subr.mxu0 0.0
        %740 = vmatpush1.msra.mxu0 0.0
        %741 = vmatprep.subr.mxu0 0.0
        %742 = vmatpush1.msra.mxu0 0.0
        %743 = vmatprep.subr.mxu0 0.0
        %744 = vmatpush1.msra.mxu0 0.0
        %745 = vmatprep.subr.mxu0 0.0
        %746 = vmatpush1.msra.mxu0 0.0
        %747 = vmatprep.subr.mxu0 0.0
        %748 = vmatpush1.msra.mxu0 0.0
        %749 = vmatprep.subr.mxu0 0.0
        %750 = vmatpush1.msra.mxu0 0.0
        %751 = vmatprep.subr.mxu0 0.0
        %752 = vmatpush1.msra.mxu0 0.0
        %753 = vmatprep.mubr.f32.mxu0 0.0
        %754 = vmatmul.mubr.f32.gmra.mrb[0].mxu0 %v687
        %v755 = vpop.f32.mrb[0].mxu0
        %v756 = vadd.f32 0.0, %v755
        %v757 = vpop.f32.mrb[0].mxu0
        %758 = vdwg.mxu0
        %v759 = vmul.f32 %v756, %v515
        %v761 = vsel %vm587, %v428, 0
        %v764 = vsel %vm594, %v572, 0
        %766 = vmatprep.subr.mxu0 0.0
        %767 = vmatpush1.msra.mxu0 %v764
        %768 = vmatprep.subr.mxu0 0.0
        %769 = vmatpush1.msra.mxu0 0.0
        %770 = vmatprep.subr.mxu0 0.0
        %771 = vmatpush1.msra.mxu0 0.0
        %772 = vmatprep.subr.mxu0 0.0
        %773 = vmatpush1.msra.mxu0 0.0
        %774 = vmatprep.subr.mxu0 0.0
        %775 = vmatpush1.msra.mxu0 0.0
        %776 = vmatprep.subr.mxu0 0.0
        %777 = vmatpush1.msra.mxu0 0.0
        %778 = vmatprep.subr.mxu0 0.0
        %779 = vmatpush1.msra.mxu0 0.0
        %780 = vmatprep.subr.mxu0 0.0
        %781 = vmatpush1.msra.mxu0 0.0
        %782 = vmatprep.subr.mxu0 0.0
        %783 = vmatpush1.msra.mxu0 0.0
        %784 = vmatprep.subr.mxu0 0.0
        %785 = vmatpush1.msra.mxu0 0.0
        %786 = vmatprep.subr.mxu0 0.0
        %787 = vmatpush1.msra.mxu0 0.0
        %788 = vmatprep.subr.mxu0 0.0
        %789 = vmatpush1.msra.mxu0 0.0
        %790 = vmatprep.subr.mxu0 0.0
        %791 = vmatpush1.msra.mxu0 0.0
        %792 = vmatprep.subr.mxu0 0.0
        %793 = vmatpush1.msra.mxu0 0.0
        %794 = vmatprep.subr.mxu0 0.0
        %795 = vmatpush1.msra.mxu0 0.0
        %796 = vmatprep.subr.mxu0 0.0
        %797 = vmatpush1.msra.mxu0 0.0
        %798 = vmatprep.subr.mxu0 0.0
        %799 = vmatpush1.msra.mxu0 0.0
        %800 = vmatprep.subr.mxu0 0.0
        %801 = vmatpush1.msra.mxu0 0.0
        %802 = vmatprep.subr.mxu0 0.0
        %803 = vmatpush1.msra.mxu0 0.0
        %804 = vmatprep.subr.mxu0 0.0
        %805 = vmatpush1.msra.mxu0 0.0
        %806 = vmatprep.subr.mxu0 0.0
        %807 = vmatpush1.msra.mxu0 0.0
        %808 = vmatprep.subr.mxu0 0.0
        %809 = vmatpush1.msra.mxu0 0.0
        %810 = vmatprep.subr.mxu0 0.0
        %811 = vmatpush1.msra.mxu0 0.0
        %812 = vmatprep.subr.mxu0 0.0
        %813 = vmatpush1.msra.mxu0 0.0
        %814 = vmatprep.subr.mxu0 0.0
        %815 = vmatpush1.msra.mxu0 0.0
        %816 = vmatprep.subr.mxu0 0.0
        %817 = vmatpush1.msra.mxu0 0.0
        %818 = vmatprep.subr.mxu0 0.0
        %819 = vmatpush1.msra.mxu0 0.0
        %820 = vmatprep.subr.mxu0 0.0
        %821 = vmatpush1.msra.mxu0 0.0
        %822 = vmatprep.subr.mxu0 0.0
        %823 = vmatpush1.msra.mxu0 0.0
        %824 = vmatprep.subr.mxu0 0.0
        %825 = vmatpush1.msra.mxu0 0.0
        %826 = vmatprep.subr.mxu0 0.0
        %827 = vmatpush1.msra.mxu0 0.0
        %828 = vmatprep.subr.mxu0 0.0
        %829 = vmatpush1.msra.mxu0 0.0
        %830 = vmatprep.mubr.f32.mxu0 0.0
        %831 = vmatmul.mubr.f32.gmra.mrb[0].mxu0 %v761
        %v832 = vpop.f32.mrb[0].mxu0
        %v833 = vadd.f32 0.0, %v832
        %v834 = vpop.f32.mrb[0].mxu0
        %835 = vdwg.mxu0
        %v836 = vlaneseq
        %v837 = vshrl.u32 %v836, 7
        %v838 = vsub.s32 0, %v837
        %v839 = vrot.slane %v586, %v838
        %vm840 = vcmask 64512
        %v842 = vsel %vm840, %v759, 0
        %844 = vmatprep.subr.mxu0 0.0
        %845 = vmatpush1.msra.mxu0 %v833
        %846 = vmatprep.subr.mxu0 0.0
        %847 = vmatpush1.msra.mxu0 0.0
        %848 = vmatprep.subr.mxu0 0.0
        %849 = vmatpush1.msra.mxu0 0.0
        %850 = vmatprep.subr.mxu0 0.0
        %851 = vmatpush1.msra.mxu0 0.0
        %852 = vmatprep.subr.mxu0 0.0
        %853 = vmatpush1.msra.mxu0 0.0
        %854 = vmatprep.subr.mxu0 0.0
        %855 = vmatpush1.msra.mxu0 0.0
        %856 = vmatprep.subr.mxu0 0.0
        %857 = vmatpush1.msra.mxu0 0.0
        %858 = vmatprep.subr.mxu0 0.0
        %859 = vmatpush1.msra.mxu0 0.0
        %860 = vmatprep.subr.mxu0 0.0
        %861 = vmatpush1.msra.mxu0 0.0
        %862 = vmatprep.subr.mxu0 0.0
        %863 = vmatpush1.msra.mxu0 0.0
        %864 = vmatprep.subr.mxu0 0.0
        %865 = vmatpush1.msra.mxu0 0.0
        %866 = vmatprep.subr.mxu0 0.0
        %867 = vmatpush1.msra.mxu0 0.0
        %868 = vmatprep.subr.mxu0 0.0
        %869 = vmatpush1.msra.mxu0 0.0
        %870 = vmatprep.subr.mxu0 0.0
        %871 = vmatpush1.msra.mxu0 0.0
        %872 = vmatprep.subr.mxu0 0.0
        %873 = vmatpush1.msra.mxu0 0.0
        %874 = vmatprep.subr.mxu0 0.0
        %875 = vmatpush1.msra.mxu0 0.0
        %876 = vmatprep.subr.mxu0 0.0
        %877 = vmatpush1.msra.mxu0 0.0
        %878 = vmatprep.subr.mxu0 0.0
        %879 = vmatpush1.msra.mxu0 0.0
        %880 = vmatprep.subr.mxu0 0.0
        %881 = vmatpush1.msra.mxu0 0.0
        %882 = vmatprep.subr.mxu0 0.0
        %883 = vmatpush1.msra.mxu0 0.0
        %884 = vmatprep.subr.mxu0 0.0
        %885 = vmatpush1.msra.mxu0 0.0
        %886 = vmatprep.subr.mxu0 0.0
        %887 = vmatpush1.msra.mxu0 0.0
        %888 = vmatprep.subr.mxu0 0.0
        %889 = vmatpush1.msra.mxu0 0.0
        %890 = vmatprep.subr.mxu0 0.0
        %891 = vmatpush1.msra.mxu0 0.0
        %892 = vmatprep.subr.mxu0 0.0
        %893 = vmatpush1.msra.mxu0 0.0
        %894 = vmatprep.subr.mxu0 0.0
        %895 = vmatpush1.msra.mxu0 0.0
        %896 = vmatprep.subr.mxu0 0.0
        %897 = vmatpush1.msra.mxu0 0.0
        %898 = vmatprep.subr.mxu0 0.0
        %899 = vmatpush1.msra.mxu0 0.0
        %900 = vmatprep.subr.mxu0 0.0
        %901 = vmatpush1.msra.mxu0 0.0
        %902 = vmatprep.subr.mxu0 0.0
        %903 = vmatpush1.msra.mxu0 0.0
        %904 = vmatprep.subr.mxu0 0.0
        %905 = vmatpush1.msra.mxu0 0.0
        %906 = vmatprep.subr.mxu0 0.0
        %907 = vmatpush1.msra.mxu0 0.0
        %908 = vmatprep.mubr.f32.mxu0 0.0
        %909 = vmatmul.mubr.f32.gmra.mrb[0].mxu0 %v842
        %v910 = vpop.f32.mrb[0].mxu0
        %v911 = vadd.f32 %v839, %v910
        %v912 = vpop.f32.mrb[0].mxu0
        %913 = vdwg.mxu0
        %v914 = vmax.f32 %v911, 0.0
        %918 = vrot.lane.b32.xlu0 %v582, 127
        %v919 = vpop.permute.xlu0 %918
        %920 = vrot.lane.b32.xlu0 %v583, 127
        %v921 = vpop.permute.xlu0 %920
        %922 = vrot.lane.b32.xlu0 %v584, 127
        %v923 = vpop.permute.xlu0 %922
        %924 = vrot.lane.b32.xlu0 %v585, 127
        %v925 = vpop.permute.xlu0 %924
        %vm930 = vcmask 261120
        %v932 = vsel %vm930, %v914, 0
        %934 = vmatprep.subr.mxu0 0.0
        %935 = vmatpush1.msra.mxu0 %v919
        %936 = vmatprep.subr.mxu0 0.0
        %937 = vmatpush1.msra.mxu0 %v921
        %938 = vmatprep.subr.mxu0 0.0
        %939 = vmatpush1.msra.mxu0 %v923
        %940 = vmatprep.subr.mxu0 0.0
        %941 = vmatpush1.msra.mxu0 %v925
        %942 = vmatprep.subr.mxu0 0.0
        %943 = vmatpush1.msra.mxu0 0.0
        %944 = vmatprep.subr.mxu0 0.0
        %945 = vmatpush1.msra.mxu0 0.0
        %946 = vmatprep.subr.mxu0 0.0
        %947 = vmatpush1.msra.mxu0 0.0
        %948 = vmatprep.subr.mxu0 0.0
        %949 = vmatpush1.msra.mxu0 0.0
        %950 = vmatprep.subr.mxu0 0.0
        %951 = vmatpush1.msra.mxu0 0.0
        %952 = vmatprep.subr.mxu0 0.0
        %953 = vmatpush1.msra.mxu0 0.0
        %954 = vmatprep.subr.mxu0 0.0
        %955 = vmatpush1.msra.mxu0 0.0
        %956 = vmatprep.subr.mxu0 0.0
        %957 = vmatpush1.msra.mxu0 0.0
        %958 = vmatprep.subr.mxu0 0.0
        %959 = vmatpush1.msra.mxu0 0.0
        %960 = vmatprep.subr.mxu0 0.0
        %961 = vmatpush1.msra.mxu0 0.0
        %962 = vmatprep.subr.mxu0 0.0
        %963 = vmatpush1.msra.mxu0 0.0
        %964 = vmatprep.subr.mxu0 0.0
        %965 = vmatpush1.msra.mxu0 0.0
        %966 = vmatprep.subr.mxu0 0.0
        %967 = vmatpush1.msra.mxu0 0.0
        %968 = vmatprep.subr.mxu0 0.0
        %969 = vmatpush1.msra.mxu0 0.0
        %970 = vmatprep.subr.mxu0 0.0
        %971 = vmatpush1.msra.mxu0 0.0
        %972 = vmatprep.subr.mxu0 0.0
        %973 = vmatpush1.msra.mxu0 0.0
        %974 = vmatprep.subr.mxu0 0.0
        %975 = vmatpush1.msra.mxu0 0.0
        %976 = vmatprep.subr.mxu0 0.0
        %977 = vmatpush1.msra.mxu0 0.0
        %978 = vmatprep.subr.mxu0 0.0
        %979 = vmatpush1.msra.mxu0 0.0
        %980 = vmatprep.subr.mxu0 0.0
        %981 = vmatpush1.msra.mxu0 0.0
        %982 = vmatprep.subr.mxu0 0.0
        %983 = vmatpush1.msra.mxu0 0.0
        %984 = vmatprep.subr.mxu0 0.0
        %985 = vmatpush1.msra.mxu0 0.0
        %986 = vmatprep.subr.mxu0 0.0
        %987 = vmatpush1.msra.mxu0 0.0
        %988 = vmatprep.subr.mxu0 0.0
        %989 = vmatpush1.msra.mxu0 0.0
        %990 = vmatprep.subr.mxu0 0.0
        %991 = vmatpush1.msra.mxu0 0.0
        %992 = vmatprep.subr.mxu0 0.0
        %993 = vmatpush1.msra.mxu0 0.0
        %994 = vmatprep.subr.mxu0 0.0
        %995 = vmatpush1.msra.mxu0 0.0
        %996 = vmatprep.subr.mxu0 0.0
        %997 = vmatpush1.msra.mxu0 0.0
        %998 = vmatprep.mubr.f32.mxu0 0.0
        %999 = vmatmul.mubr.f32.gmra.mrb[0].mxu0 %v932
        %v1000 = vpop.f32.mrb[0].mxu0
        %v1001 = vadd.f32 0.0, %v1000
        %v1002 = vpop.f32.mrb[0].mxu0
        %1003 = vdwg.mxu0
        %1005 = vset.pattern.permute.xlu0 0
        %1006 = vperm.xlu0 %1005, %v1001
        %v1007 = vpop.permute.xlu0 %1006
        %v1009 = vmul.f32 %v436, %v1007
        %v1011 = vsel %vm594, %v573, 0
        %1013 = vmatprep.subr.mxu0 0.0
        %1014 = vmatpush1.msra.mxu0 %v1011
        %1015 = vmatprep.subr.mxu0 0.0
        %1016 = vmatpush1.msra.mxu0 0.0
        %1017 = vmatprep.subr.mxu0 0.0
        %1018 = vmatpush1.msra.mxu0 0.0
        %1019 = vmatprep.subr.mxu0 0.0
        %1020 = vmatpush1.msra.mxu0 0.0
        %1021 = vmatprep.subr.mxu0 0.0
        %1022 = vmatpush1.msra.mxu0 0.0
        %1023 = vmatprep.subr.mxu0 0.0
        %1024 = vmatpush1.msra.mxu0 0.0
        %1025 = vmatprep.subr.mxu0 0.0
        %1026 = vmatpush1.msra.mxu0 0.0
        %1027 = vmatprep.subr.mxu0 0.0
        %1028 = vmatpush1.msra.mxu0 0.0
        %1029 = vmatprep.subr.mxu0 0.0
        %1030 = vmatpush1.msra.mxu0 0.0
        %1031 = vmatprep.subr.mxu0 0.0
        %1032 = vmatpush1.msra.mxu0 0.0
        %1033 = vmatprep.subr.mxu0 0.0
        %1034 = vmatpush1.msra.mxu0 0.0
        %1035 = vmatprep.subr.mxu0 0.0
        %1036 = vmatpush1.msra.mxu0 0.0
        %1037 = vmatprep.subr.mxu0 0.0
        %1038 = vmatpush1.msra.mxu0 0.0
        %1039 = vmatprep.subr.mxu0 0.0
        %1040 = vmatpush1.msra.mxu0 0.0
        %1041 = vmatprep.subr.mxu0 0.0
        %1042 = vmatpush1.msra.mxu0 0.0
        %1043 = vmatprep.subr.mxu0 0.0
        %1044 = vmatpush1.msra.mxu0 0.0
        %1045 = vmatprep.subr.mxu0 0.0
        %1046 = vmatpush1.msra.mxu0 0.0
        %1047 = vmatprep.subr.mxu0 0.0
        %1048 = vmatpush1.msra.mxu0 0.0
        %1049 = vmatprep.subr.mxu0 0.0
        %1050 = vmatpush1.msra.mxu0 0.0
        %1051 = vmatprep.subr.mxu0 0.0
        %1052 = vmatpush1.msra.mxu0 0.0
        %1053 = vmatprep.subr.mxu0 0.0
        %1054 = vmatpush1.msra.mxu0 0.0
        %1055 = vmatprep.subr.mxu0 0.0
        %1056 = vmatpush1.msra.mxu0 0.0
        %1057 = vmatprep.subr.mxu0 0.0
        %1058 = vmatpush1.msra.mxu0 0.0
        %1059 = vmatprep.subr.mxu0 0.0
        %1060 = vmatpush1.msra.mxu0 0.0
        %1061 = vmatprep.subr.mxu0 0.0
        %1062 = vmatpush1.msra.mxu0 0.0
        %1063 = vmatprep.subr.mxu0 0.0
        %1064 = vmatpush1.msra.mxu0 0.0
        %1065 = vmatprep.subr.mxu0 0.0
        %1066 = vmatpush1.msra.mxu0 0.0
        %1067 = vmatprep.subr.mxu0 0.0
        %1068 = vmatpush1.msra.mxu0 0.0
        %1069 = vmatprep.subr.mxu0 0.0
        %1070 = vmatpush1.msra.mxu0 0.0
        %1071 = vmatprep.subr.mxu0 0.0
        %1072 = vmatpush1.msra.mxu0 0.0
        %1073 = vmatprep.subr.mxu0 0.0
        %1074 = vmatpush1.msra.mxu0 0.0
        %1075 = vmatprep.subr.mxu0 0.0
        %1076 = vmatpush1.msra.mxu0 0.0
        %1077 = vmatprep.mubr.f32.mxu0 0.0
        %1078 = vmatmul.mubr.f32.gmra.mrb[0].mxu0 %v589
        %v1079 = vpop.f32.mrb[0].mxu0
        %v1080 = vadd.f32 0.0, %v1079
        %v1081 = vpop.f32.mrb[0].mxu0
        %1082 = vmatprep.mubr.f32.mxu0 0.0
        %1083 = vmatmul.mubr.f32.gmra.mrb[0].mxu0 %v592
        %v1084 = vpop.f32.mrb[0].mxu0
        %v1085 = vadd.f32 0.0, %v1084
        %v1086 = vpop.f32.mrb[0].mxu0
        %1087 = vdwg.mxu0
        %v1089 = vsel %vm840, %v453, 0
        %1091 = vmatprep.subr.mxu0 0.0
        %1092 = vmatpush1.msra.mxu0 %v1009
        %1093 = vmatprep.subr.mxu0 0.0
        %1094 = vmatpush1.msra.mxu0 0.0
        %1095 = vmatprep.subr.mxu0 0.0
        %1096 = vmatpush1.msra.mxu0 0.0
        %1097 = vmatprep.subr.mxu0 0.0
        %1098 = vmatpush1.msra.mxu0 0.0
        %1099 = vmatprep.subr.mxu0 0.0
        %1100 = vmatpush1.msra.mxu0 0.0
        %1101 = vmatprep.subr.mxu0 0.0
        %1102 = vmatpush1.msra.mxu0 0.0
        %1103 = vmatprep.subr.mxu0 0.0
        %1104 = vmatpush1.msra.mxu0 0.0
        %1105 = vmatprep.subr.mxu0 0.0
        %1106 = vmatpush1.msra.mxu0 0.0
        %1107 = vmatprep.subr.mxu0 0.0
        %1108 = vmatpush1.msra.mxu0 0.0
        %1109 = vmatprep.subr.mxu0 0.0
        %1110 = vmatpush1.msra.mxu0 0.0
        %1111 = vmatprep.subr.mxu0 0.0
        %1112 = vmatpush1.msra.mxu0 0.0
        %1113 = vmatprep.subr.mxu0 0.0
        %1114 = vmatpush1.msra.mxu0 0.0
        %1115 = vmatprep.subr.mxu0 0.0
        %1116 = vmatpush1.msra.mxu0 0.0
        %1117 = vmatprep.subr.mxu0 0.0
        %1118 = vmatpush1.msra.mxu0 0.0
        %1119 = vmatprep.subr.mxu0 0.0
        %1120 = vmatpush1.msra.mxu0 0.0
        %1121 = vmatprep.subr.mxu0 0.0
        %1122 = vmatpush1.msra.mxu0 0.0
        %1123 = vmatprep.subr.mxu0 0.0
        %1124 = vmatpush1.msra.mxu0 0.0
        %1125 = vmatprep.subr.mxu0 0.0
        %1126 = vmatpush1.msra.mxu0 0.0
        %1127 = vmatprep.subr.mxu0 0.0
        %1128 = vmatpush1.msra.mxu0 0.0
        %1129 = vmatprep.subr.mxu0 0.0
        %1130 = vmatpush1.msra.mxu0 0.0
        %1131 = vmatprep.subr.mxu0 0.0
        %1132 = vmatpush1.msra.mxu0 0.0
        %1133 = vmatprep.subr.mxu0 0.0
        %1134 = vmatpush1.msra.mxu0 0.0
        %1135 = vmatprep.subr.mxu0 0.0
        %1136 = vmatpush1.msra.mxu0 0.0
        %1137 = vmatprep.subr.mxu0 0.0
        %1138 = vmatpush1.msra.mxu0 0.0
        %1139 = vmatprep.subr.mxu0 0.0
        %1140 = vmatpush1.msra.mxu0 0.0
        %1141 = vmatprep.subr.mxu0 0.0
        %1142 = vmatpush1.msra.mxu0 0.0
        %1143 = vmatprep.subr.mxu0 0.0
        %1144 = vmatpush1.msra.mxu0 0.0
        %1145 = vmatprep.subr.mxu0 0.0
        %1146 = vmatpush1.msra.mxu0 0.0
        %1147 = vmatprep.subr.mxu0 0.0
        %1148 = vmatpush1.msra.mxu0 0.0
        %1149 = vmatprep.subr.mxu0 0.0
        %1150 = vmatpush1.msra.mxu0 0.0
        %1151 = vmatprep.subr.mxu0 0.0
        %1152 = vmatpush1.msra.mxu0 0.0
        %1153 = vmatprep.subr.mxu0 0.0
        %1154 = vmatpush1.msra.mxu0 0.0
        %1155 = vmatprep.mubr.f32.mxu0 0.0
        %1156 = vmatmul.mubr.f32.gmra.mrb[0].mxu0 %v1089
        %v1157 = vpop.f32.mrb[0].mxu0
        %v1158 = vadd.f32 0.0, %v1157
        %v1159 = vpop.f32.mrb[0].mxu0
        %1160 = vdwg.mxu0
        %v1161 = vmul.f32 %v1158, %v570
        %v1162 = vlaneseq
        %v1163 = vshrl.u32 %v1162, 7
        %v1164 = vsub.s32 1, %v1163
        %v1165 = vrot.slane %v586, %v1164
        %v1167 = vsel %vm685, %v1161, 0
        %1169 = vmatprep.subr.mxu0 0.0
        %1170 = vmatpush1.msra.mxu0 %v1080
        %1171 = vmatprep.subr.mxu0 0.0
        %1172 = vmatpush1.msra.mxu0 %v1085
        %1173 = vmatprep.subr.mxu0 0.0
        %1174 = vmatpush1.msra.mxu0 0.0
        %1175 = vmatprep.subr.mxu0 0.0
        %1176 = vmatpush1.msra.mxu0 0.0
        %1177 = vmatprep.subr.mxu0 0.0
        %1178 = vmatpush1.msra.mxu0 0.0
        %1179 = vmatprep.subr.mxu0 0.0
        %1180 = vmatpush1.msra.mxu0 0.0
        %1181 = vmatprep.subr.mxu0 0.0
        %1182 = vmatpush1.msra.mxu0 0.0
        %1183 = vmatprep.subr.mxu0 0.0
        %1184 = vmatpush1.msra.mxu0 0.0
        %1185 = vmatprep.subr.mxu0 0.0
        %1186 = vmatpush1.msra.mxu0 0.0
        %1187 = vmatprep.subr.mxu0 0.0
        %1188 = vmatpush1.msra.mxu0 0.0
        %1189 = vmatprep.subr.mxu0 0.0
        %1190 = vmatpush1.msra.mxu0 0.0
        %1191 = vmatprep.subr.mxu0 0.0
        %1192 = vmatpush1.msra.mxu0 0.0
        %1193 = vmatprep.subr.mxu0 0.0
        %1194 = vmatpush1.msra.mxu0 0.0
        %1195 = vmatprep.subr.mxu0 0.0
        %1196 = vmatpush1.msra.mxu0 0.0
        %1197 = vmatprep.subr.mxu0 0.0
        %1198 = vmatpush1.msra.mxu0 0.0
        %1199 = vmatprep.subr.mxu0 0.0
        %1200 = vmatpush1.msra.mxu0 0.0
        %1201 = vmatprep.subr.mxu0 0.0
        %1202 = vmatpush1.msra.mxu0 0.0
        %1203 = vmatprep.subr.mxu0 0.0
        %1204 = vmatpush1.msra.mxu0 0.0
        %1205 = vmatprep.subr.mxu0 0.0
        %1206 = vmatpush1.msra.mxu0 0.0
        %1207 = vmatprep.subr.mxu0 0.0
        %1208 = vmatpush1.msra.mxu0 0.0
        %1209 = vmatprep.subr.mxu0 0.0
        %1210 = vmatpush1.msra.mxu0 0.0
        %1211 = vmatprep.subr.mxu0 0.0
        %1212 = vmatpush1.msra.mxu0 0.0
        %1213 = vmatprep.subr.mxu0 0.0
        %1214 = vmatpush1.msra.mxu0 0.0
        %1215 = vmatprep.subr.mxu0 0.0
        %1216 = vmatpush1.msra.mxu0 0.0
        %1217 = vmatprep.subr.mxu0 0.0
        %1218 = vmatpush1.msra.mxu0 0.0
        %1219 = vmatprep.subr.mxu0 0.0
        %1220 = vmatpush1.msra.mxu0 0.0
        %1221 = vmatprep.subr.mxu0 0.0
        %1222 = vmatpush1.msra.mxu0 0.0
        %1223 = vmatprep.subr.mxu0 0.0
        %1224 = vmatpush1.msra.mxu0 0.0
        %1225 = vmatprep.subr.mxu0 0.0
        %1226 = vmatpush1.msra.mxu0 0.0
        %1227 = vmatprep.subr.mxu0 0.0
        %1228 = vmatpush1.msra.mxu0 0.0
        %1229 = vmatprep.subr.mxu0 0.0
        %1230 = vmatpush1.msra.mxu0 0.0
        %1231 = vmatprep.subr.mxu0 0.0
        %1232 = vmatpush1.msra.mxu0 0.0
        %1233 = vmatprep.mubr.f32.mxu0 0.0
        %1234 = vmatmul.mubr.f32.gmra.mrb[0].mxu0 %v1167
        %v1235 = vpop.f32.mrb[0].mxu0
        %v1236 = vadd.f32 %v1165, %v1235
        %v1237 = vpop.f32.mrb[0].mxu0
        %1238 = vdwg.mxu0
        %v1239 = vmax.f32 %v1236, 0.0
        %v1241 = vsel %vm840, %v454, 0
        %1243 = vmatprep.subr.mxu0 0.0
        %1244 = vmatpush1.msra.mxu0 %v1009
        %1245 = vmatprep.subr.mxu0 0.0
        %1246 = vmatpush1.msra.mxu0 0.0
        %1247 = vmatprep.subr.mxu0 0.0
        %1248 = vmatpush1.msra.mxu0 0.0
        %1249 = vmatprep.subr.mxu0 0.0
        %1250 = vmatpush1.msra.mxu0 0.0
        %1251 = vmatprep.subr.mxu0 0.0
        %1252 = vmatpush1.msra.mxu0 0.0
        %1253 = vmatprep.subr.mxu0 0.0
        %1254 = vmatpush1.msra.mxu0 0.0
        %1255 = vmatprep.subr.mxu0 0.0
        %1256 = vmatpush1.msra.mxu0 0.0
        %1257 = vmatprep.subr.mxu0 0.0
        %1258 = vmatpush1.msra.mxu0 0.0
        %1259 = vmatprep.subr.mxu0 0.0
        %1260 = vmatpush1.msra.mxu0 0.0
        %1261 = vmatprep.subr.mxu0 0.0
        %1262 = vmatpush1.msra.mxu0 0.0
        %1263 = vmatprep.subr.mxu0 0.0
        %1264 = vmatpush1.msra.mxu0 0.0
        %1265 = vmatprep.subr.mxu0 0.0
        %1266 = vmatpush1.msra.mxu0 0.0
        %1267 = vmatprep.subr.mxu0 0.0
        %1268 = vmatpush1.msra.mxu0 0.0
        %1269 = vmatprep.subr.mxu0 0.0
        %1270 = vmatpush1.msra.mxu0 0.0
        %1271 = vmatprep.subr.mxu0 0.0
        %1272 = vmatpush1.msra.mxu0 0.0
        %1273 = vmatprep.subr.mxu0 0.0
        %1274 = vmatpush1.msra.mxu0 0.0
        %1275 = vmatprep.subr.mxu0 0.0
        %1276 = vmatpush1.msra.mxu0 0.0
        %1277 = vmatprep.subr.mxu0 0.0
        %1278 = vmatpush1.msra.mxu0 0.0
        %1279 = vmatprep.subr.mxu0 0.0
        %1280 = vmatpush1.msra.mxu0 0.0
        %1281 = vmatprep.subr.mxu0 0.0
        %1282 = vmatpush1.msra.mxu0 0.0
        %1283 = vmatprep.subr.mxu0 0.0
        %1284 = vmatpush1.msra.mxu0 0.0
        %1285 = vmatprep.subr.mxu0 0.0
        %1286 = vmatpush1.msra.mxu0 0.0
        %1287 = vmatprep.subr.mxu0 0.0
        %1288 = vmatpush1.msra.mxu0 0.0
        %1289 = vmatprep.subr.mxu0 0.0
        %1290 = vmatpush1.msra.mxu0 0.0
        %1291 = vmatprep.subr.mxu0 0.0
        %1292 = vmatpush1.msra.mxu0 0.0
        %1293 = vmatprep.subr.mxu0 0.0
        %1294 = vmatpush1.msra.mxu0 0.0
        %1295 = vmatprep.subr.mxu0 0.0
        %1296 = vmatpush1.msra.mxu0 0.0
        %1297 = vmatprep.subr.mxu0 0.0
        %1298 = vmatpush1.msra.mxu0 0.0
        %1299 = vmatprep.subr.mxu0 0.0
        %1300 = vmatpush1.msra.mxu0 0.0
        %1301 = vmatprep.subr.mxu0 0.0
        %1302 = vmatpush1.msra.mxu0 0.0
        %1303 = vmatprep.subr.mxu0 0.0
        %1304 = vmatpush1.msra.mxu0 0.0
        %1305 = vmatprep.subr.mxu0 0.0
        %1306 = vmatpush1.msra.mxu0 0.0
        %1307 = vmatprep.mubr.f32.mxu0 0.0
        %1308 = vmatmul.mubr.f32.gmra.mrb[0].mxu0 %v1241
        %v1309 = vpop.f32.mrb[0].mxu0
        %v1310 = vadd.f32 0.0, %v1309
        %v1311 = vpop.f32.mrb[0].mxu0
        %1312 = vdwg.mxu0
        %v1313 = vmul.f32 %v1310, %v571
        %v1315 = vsel %vm685, %v1313, 0
        %1317 = vmatprep.subr.mxu0 0.0
        %1318 = vmatpush1.msra.mxu0 %v1080
        %1319 = vmatprep.subr.mxu0 0.0
        %1320 = vmatpush1.msra.mxu0 %v1085
        %1321 = vmatprep.subr.mxu0 0.0
        %1322 = vmatpush1.msra.mxu0 0.0
        %1323 = vmatprep.subr.mxu0 0.0
        %1324 = vmatpush1.msra.mxu0 0.0
        %1325 = vmatprep.subr.mxu0 0.0
        %1326 = vmatpush1.msra.mxu0 0.0
        %1327 = vmatprep.subr.mxu0 0.0
        %1328 = vmatpush1.msra.mxu0 0.0
        %1329 = vmatprep.subr.mxu0 0.0
        %1330 = vmatpush1.msra.mxu0 0.0
        %1331 = vmatprep.subr.mxu0 0.0
        %1332 = vmatpush1.msra.mxu0 0.0
        %1333 = vmatprep.subr.mxu0 0.0
        %1334 = vmatpush1.msra.mxu0 0.0
        %1335 = vmatprep.subr.mxu0 0.0
        %1336 = vmatpush1.msra.mxu0 0.0
        %1337 = vmatprep.subr.mxu0 0.0
        %1338 = vmatpush1.msra.mxu0 0.0
        %1339 = vmatprep.subr.mxu0 0.0
        %1340 = vmatpush1.msra.mxu0 0.0
        %1341 = vmatprep.subr.mxu0 0.0
        %1342 = vmatpush1.msra.mxu0 0.0
        %1343 = vmatprep.subr.mxu0 0.0
        %1344 = vmatpush1.msra.mxu0 0.0
        %1345 = vmatprep.subr.mxu0 0.0
        %1346 = vmatpush1.msra.mxu0 0.0
        %1347 = vmatprep.subr.mxu0 0.0
        %1348 = vmatpush1.msra.mxu0 0.0
        %1349 = vmatprep.subr.mxu0 0.0
        %1350 = vmatpush1.msra.mxu0 0.0
        %1351 = vmatprep.subr.mxu0 0.0
        %1352 = vmatpush1.msra.mxu0 0.0
        %1353 = vmatprep.subr.mxu0 0.0
        %1354 = vmatpush1.msra.mxu0 0.0
        %1355 = vmatprep.subr.mxu0 0.0
        %1356 = vmatpush1.msra.mxu0 0.0
        %1357 = vmatprep.subr.mxu0 0.0
        %1358 = vmatpush1.msra.mxu0 0.0
        %1359 = vmatprep.subr.mxu0 0.0
        %1360 = vmatpush1.msra.mxu0 0.0
        %1361 = vmatprep.subr.mxu0 0.0
        %1362 = vmatpush1.msra.mxu0 0.0
        %1363 = vmatprep.subr.mxu0 0.0
        %1364 = vmatpush1.msra.mxu0 0.0
        %1365 = vmatprep.subr.mxu0 0.0
        %1366 = vmatpush1.msra.mxu0 0.0
        %1367 = vmatprep.subr.mxu0 0.0
        %1368 = vmatpush1.msra.mxu0 0.0
        %1369 = vmatprep.subr.mxu0 0.0
        %1370 = vmatpush1.msra.mxu0 0.0
        %1371 = vmatprep.subr.mxu0 0.0
        %1372 = vmatpush1.msra.mxu0 0.0
        %1373 = vmatprep.subr.mxu0 0.0
        %1374 = vmatpush1.msra.mxu0 0.0
        %1375 = vmatprep.subr.mxu0 0.0
        %1376 = vmatpush1.msra.mxu0 0.0
        %1377 = vmatprep.subr.mxu0 0.0
        %1378 = vmatpush1.msra.mxu0 0.0
        %1379 = vmatprep.subr.mxu0 0.0
        %1380 = vmatpush1.msra.mxu0 0.0
        %1381 = vmatprep.mubr.f32.mxu0 0.0
        %1382 = vmatmul.mubr.f32.gmra.mrb[0].mxu0 %v1315
        %v1383 = vpop.f32.mrb[0].mxu0
        %v1384 = vadd.f32 %v1165, %v1383
        %v1385 = vpop.f32.mrb[0].mxu0
        %1386 = vdwg.mxu0
        %v1387 = vmax.f32 %v1384, 0.0
        %1388 = vrot.lane.b32.xlu0 %v582, 126
        %v1389 = vpop.permute.xlu0 %1388
        %1390 = vrot.lane.b32.xlu0 %v583, 126
        %v1391 = vpop.permute.xlu0 %1390
        %1392 = vrot.lane.b32.xlu0 %v584, 126
        %v1393 = vpop.permute.xlu0 %1392
        %1394 = vrot.lane.b32.xlu0 %v585, 126
        %v1395 = vpop.permute.xlu0 %1394
        %v1401 = vsel %vm930, %v1239, 0
        %v1404 = vsel %vm930, %v1387, 0
        %1406 = vmatprep.subr.mxu0 0.0
        %1407 = vmatpush1.msra.mxu0 %v1389
        %1408 = vmatprep.subr.mxu0 0.0
        %1409 = vmatpush1.msra.mxu0 %v1391
        %1410 = vmatprep.subr.mxu0 0.0
        %1411 = vmatpush1.msra.mxu0 %v1393
        %1412 = vmatprep.subr.mxu0 0.0
        %1413 = vmatpush1.msra.mxu0 %v1395
        %1414 = vmatprep.subr.mxu0 0.0
        %1415 = vmatpush1.msra.mxu0 0.0
        %1416 = vmatprep.subr.mxu0 0.0
        %1417 = vmatpush1.msra.mxu0 0.0
        %1418 = vmatprep.subr.mxu0 0.0
        %1419 = vmatpush1.msra.mxu0 0.0
        %1420 = vmatprep.subr.mxu0 0.0
        %1421 = vmatpush1.msra.mxu0 0.0
        %1422 = vmatprep.subr.mxu0 0.0
        %1423 = vmatpush1.msra.mxu0 0.0
        %1424 = vmatprep.subr.mxu0 0.0
        %1425 = vmatpush1.msra.mxu0 0.0
        %1426 = vmatprep.subr.mxu0 0.0
        %1427 = vmatpush1.msra.mxu0 0.0
        %1428 = vmatprep.subr.mxu0 0.0
        %1429 = vmatpush1.msra.mxu0 0.0
        %1430 = vmatprep.subr.mxu0 0.0
        %1431 = vmatpush1.msra.mxu0 0.0
        %1432 = vmatprep.subr.mxu0 0.0
        %1433 = vmatpush1.msra.mxu0 0.0
        %1434 = vmatprep.subr.mxu0 0.0
        %1435 = vmatpush1.msra.mxu0 0.0
        %1436 = vmatprep.subr.mxu0 0.0
        %1437 = vmatpush1.msra.mxu0 0.0
        %1438 = vmatprep.subr.mxu0 0.0
        %1439 = vmatpush1.msra.mxu0 0.0
        %1440 = vmatprep.subr.mxu0 0.0
        %1441 = vmatpush1.msra.mxu0 0.0
        %1442 = vmatprep.subr.mxu0 0.0
        %1443 = vmatpush1.msra.mxu0 0.0
        %1444 = vmatprep.subr.mxu0 0.0
        %1445 = vmatpush1.msra.mxu0 0.0
        %1446 = vmatprep.subr.mxu0 0.0
        %1447 = vmatpush1.msra.mxu0 0.0
        %1448 = vmatprep.subr.mxu0 0.0
        %1449 = vmatpush1.msra.mxu0 0.0
        %1450 = vmatprep.subr.mxu0 0.0
        %1451 = vmatpush1.msra.mxu0 0.0
        %1452 = vmatprep.subr.mxu0 0.0
        %1453 = vmatpush1.msra.mxu0 0.0
        %1454 = vmatprep.subr.mxu0 0.0
        %1455 = vmatpush1.msra.mxu0 0.0
        %1456 = vmatprep.subr.mxu0 0.0
        %1457 = vmatpush1.msra.mxu0 0.0
        %1458 = vmatprep.subr.mxu0 0.0
        %1459 = vmatpush1.msra.mxu0 0.0
        %1460 = vmatprep.subr.mxu0 0.0
        %1461 = vmatpush1.msra.mxu0 0.0
        %1462 = vmatprep.subr.mxu0 0.0
        %1463 = vmatpush1.msra.mxu0 0.0
        %1464 = vmatprep.subr.mxu0 0.0
        %1465 = vmatpush1.msra.mxu0 0.0
        %1466 = vmatprep.subr.mxu0 0.0
        %1467 = vmatpush1.msra.mxu0 0.0
        %1468 = vmatprep.subr.mxu0 0.0
        %1469 = vmatpush1.msra.mxu0 0.0
        %1470 = vmatprep.mubr.f32.mxu0 0.0
        %1471 = vmatmul.mubr.f32.gmra.mrb[0].mxu0 %v1401
        %v1472 = vpop.f32.mrb[0].mxu0
        %v1473 = vadd.f32 0.0, %v1472
        %v1474 = vpop.f32.mrb[0].mxu0
        %1475 = vmatprep.mubr.f32.mxu0 0.0
        %1476 = vmatmul.mubr.f32.gmra.mrb[0].mxu0 %v1404
        %v1477 = vpop.f32.mrb[0].mxu0
        %v1478 = vadd.f32 0.0, %v1477
        %v1479 = vpop.f32.mrb[0].mxu0
        %1480 = vdwg.mxu0
        %1482 = vset.pattern.permute.xlu0 0
        %1483 = vperm.xlu0 %1482, %v1473
        %v1484 = vpop.permute.xlu0 %1483
        %1487 = vset.pattern.permute.xlu0 0
        %1488 = vperm.xlu0 %1487, %v1478
        %v1489 = vpop.permute.xlu0 %1488
        %v1491 = vmul.f32 %v453, %v1484
        %v1492 = vmul.f32 %v454, %v1489
        %1493 = vmatprep.subr.mxu0 0.0
        %1494 = vmatpush1.msra.mxu0 %v1491
        %1495 = vmatprep.subr.mxu0 0.0
        %1496 = vmatpush1.msra.mxu0 %v1492
        %1497 = vmatprep.subr.mxu0 0.0
        %1498 = vmatpush1.msra.mxu0 0.0
        %1499 = vmatprep.subr.mxu0 0.0
        %1500 = vmatpush1.msra.mxu0 0.0
        %1501 = vmatprep.subr.mxu0 0.0
        %1502 = vmatpush1.msra.mxu0 0.0
        %1503 = vmatprep.subr.mxu0 0.0
        %1504 = vmatpush1.msra.mxu0 0.0
        %1505 = vmatprep.subr.mxu0 0.0
        %1506 = vmatpush1.msra.mxu0 0.0
        %1507 = vmatprep.subr.mxu0 0.0
        %1508 = vmatpush1.msra.mxu0 0.0
        %1509 = vmatprep.subr.mxu0 0.0
        %1510 = vmatpush1.msra.mxu0 0.0
        %1511 = vmatprep.subr.mxu0 0.0
        %1512 = vmatpush1.msra.mxu0 0.0
        %1513 = vmatprep.subr.mxu0 0.0
        %1514 = vmatpush1.msra.mxu0 0.0
        %1515 = vmatprep.subr.mxu0 0.0
        %1516 = vmatpush1.msra.mxu0 0.0
        %1517 = vmatprep.subr.mxu0 0.0
        %1518 = vmatpush1.msra.mxu0 0.0
        %1519 = vmatprep.subr.mxu0 0.0
        %1520 = vmatpush1.msra.mxu0 0.0
        %1521 = vmatprep.subr.mxu0 0.0
        %1522 = vmatpush1.msra.mxu0 0.0
        %1523 = vmatprep.subr.mxu0 0.0
        %1524 = vmatpush1.msra.mxu0 0.0
        %1525 = vmatprep.subr.mxu0 0.0
        %1526 = vmatpush1.msra.mxu0 0.0
        %1527 = vmatprep.subr.mxu0 0.0
        %1528 = vmatpush1.msra.mxu0 0.0
        %1529 = vmatprep.subr.mxu0 0.0
        %1530 = vmatpush1.msra.mxu0 0.0
        %1531 = vmatprep.subr.mxu0 0.0
        %1532 = vmatpush1.msra.mxu0 0.0
        %1533 = vmatprep.subr.mxu0 0.0
        %1534 = vmatpush1.msra.mxu0 0.0
        %1535 = vmatprep.subr.mxu0 0.0
        %1536 = vmatpush1.msra.mxu0 0.0
        %1537 = vmatprep.subr.mxu0 0.0
        %1538 = vmatpush1.msra.mxu0 0.0
        %1539 = vmatprep.subr.mxu0 0.0
        %1540 = vmatpush1.msra.mxu0 0.0
        %1541 = vmatprep.subr.mxu0 0.0
        %1542 = vmatpush1.msra.mxu0 0.0
        %1543 = vmatprep.subr.mxu0 0.0
        %1544 = vmatpush1.msra.mxu0 0.0
        %1545 = vmatprep.subr.mxu0 0.0
        %1546 = vmatpush1.msra.mxu0 0.0
        %1547 = vmatprep.subr.mxu0 0.0
        %1548 = vmatpush1.msra.mxu0 0.0
        %1549 = vmatprep.subr.mxu0 0.0
        %1550 = vmatpush1.msra.mxu0 0.0
        %1551 = vmatprep.subr.mxu0 0.0
        %1552 = vmatpush1.msra.mxu0 0.0
        %1553 = vmatprep.subr.mxu0 0.0
        %1554 = vmatpush1.msra.mxu0 0.0
        %1555 = vmatprep.subr.mxu0 0.0
        %1556 = vmatpush1.msra.mxu0 0.0
        %1557 = vmatprep.mubr.f32.mxu0 0.0
        %1558 = vmatmul.mubr.f32.gmra.mrb[0].mxu0 %v687
        %v1559 = vpop.f32.mrb[0].mxu0
        %v1560 = vadd.f32 0.0, %v1559
        %v1561 = vpop.f32.mrb[0].mxu0
        %1562 = vdwg.mxu0
        %v1563 = vmul.f32 %v1560, %v515
        %1564 = vmatprep.subr.mxu0 0.0
        %1565 = vmatpush1.msra.mxu0 %v574
        %1566 = vmatprep.subr.mxu0 0.0
        %1567 = vmatpush1.msra.mxu0 %v575
        %1568 = vmatprep.subr.mxu0 0.0
        %1569 = vmatpush1.msra.mxu0 %v576
        %1570 = vmatprep.subr.mxu0 0.0
        %1571 = vmatpush1.msra.mxu0 %v577
        %1572 = vmatprep.subr.mxu0 0.0
        %1573 = vmatpush1.msra.mxu0 0.0
        %1574 = vmatprep.subr.mxu0 0.0
        %1575 = vmatpush1.msra.mxu0 0.0
        %1576 = vmatprep.subr.mxu0 0.0
        %1577 = vmatpush1.msra.mxu0 0.0
        %1578 = vmatprep.subr.mxu0 0.0
        %1579 = vmatpush1.msra.mxu0 0.0
        %1580 = vmatprep.subr.mxu0 0.0
        %1581 = vmatpush1.msra.mxu0 0.0
        %1582 = vmatprep.subr.mxu0 0.0
        %1583 = vmatpush1.msra.mxu0 0.0
        %1584 = vmatprep.subr.mxu0 0.0
        %1585 = vmatpush1.msra.mxu0 0.0
        %1586 = vmatprep.subr.mxu0 0.0
        %1587 = vmatpush1.msra.mxu0 0.0
        %1588 = vmatprep.subr.mxu0 0.0
        %1589 = vmatpush1.msra.mxu0 0.0
        %1590 = vmatprep.subr.mxu0 0.0
        %1591 = vmatpush1.msra.mxu0 0.0
        %1592 = vmatprep.subr.mxu0 0.0
        %1593 = vmatpush1.msra.mxu0 0.0
        %1594 = vmatprep.subr.mxu0 0.0
        %1595 = vmatpush1.msra.mxu0 0.0
        %1596 = vmatprep.subr.mxu0 0.0
        %1597 = vmatpush1.msra.mxu0 0.0
        %1598 = vmatprep.subr.mxu0 0.0
        %1599 = vmatpush1.msra.mxu0 0.0
        %1600 = vmatprep.subr.mxu0 0.0
        %1601 = vmatpush1.msra.mxu0 0.0
        %1602 = vmatprep.subr.mxu0 0.0
        %1603 = vmatpush1.msra.mxu0 0.0
        %1604 = vmatprep.subr.mxu0 0.0
        %1605 = vmatpush1.msra.mxu0 0.0
        %1606 = vmatprep.subr.mxu0 0.0
        %1607 = vmatpush1.msra.mxu0 0.0
        %1608 = vmatprep.subr.mxu0 0.0
        %1609 = vmatpush1.msra.mxu0 0.0
        %1610 = vmatprep.subr.mxu0 0.0
        %1611 = vmatpush1.msra.mxu0 0.0
        %1612 = vmatprep.subr.mxu0 0.0
        %1613 = vmatpush1.msra.mxu0 0.0
        %1614 = vmatprep.subr.mxu0 0.0
        %1615 = vmatpush1.msra.mxu0 0.0
        %1616 = vmatprep.subr.mxu0 0.0
        %1617 = vmatpush1.msra.mxu0 0.0
        %1618 = vmatprep.subr.mxu0 0.0
        %1619 = vmatpush1.msra.mxu0 0.0
        %1620 = vmatprep.subr.mxu0 0.0
        %1621 = vmatpush1.msra.mxu0 0.0
        %1622 = vmatprep.subr.mxu0 0.0
        %1623 = vmatpush1.msra.mxu0 0.0
        %1624 = vmatprep.subr.mxu0 0.0
        %1625 = vmatpush1.msra.mxu0 0.0
        %1626 = vmatprep.subr.mxu0 0.0
        %1627 = vmatpush1.msra.mxu0 0.0
        %1628 = vmatprep.mubr.f32.mxu0 0.0
        %1629 = vmatmul.mubr.f32.gmra.mrb[0].mxu0 %v932
        %v1630 = vpop.f32.mrb[0].mxu0
        %v1631 = vadd.f32 0.0, %v1630
        %v1632 = vpop.f32.mrb[0].mxu0
        %1633 = vdwg.mxu0
        %v1634 = vlaneseq
        %v1635 = vshrl.u32 %v1634, 7
        %v1636 = vsub.s32 2, %v1635
        %v1637 = vrot.slane %v586, %v1636
        %v1639 = vsel %vm840, %v1563, 0
        %1641 = vmatprep.subr.mxu0 0.0
        %1642 = vmatpush1.msra.mxu0 %v1631
        %1643 = vmatprep.subr.mxu0 0.0
        %1644 = vmatpush1.msra.mxu0 0.0
        %1645 = vmatprep.subr.mxu0 0.0
        %1646 = vmatpush1.msra.mxu0 0.0
        %1647 = vmatprep.subr.mxu0 0.0
        %1648 = vmatpush1.msra.mxu0 0.0
        %1649 = vmatprep.subr.mxu0 0.0
        %1650 = vmatpush1.msra.mxu0 0.0
        %1651 = vmatprep.subr.mxu0 0.0
        %1652 = vmatpush1.msra.mxu0 0.0
        %1653 = vmatprep.subr.mxu0 0.0
        %1654 = vmatpush1.msra.mxu0 0.0
        %1655 = vmatprep.subr.mxu0 0.0
        %1656 = vmatpush1.msra.mxu0 0.0
        %1657 = vmatprep.subr.mxu0 0.0
        %1658 = vmatpush1.msra.mxu0 0.0
        %1659 = vmatprep.subr.mxu0 0.0
        %1660 = vmatpush1.msra.mxu0 0.0
        %1661 = vmatprep.subr.mxu0 0.0
        %1662 = vmatpush1.msra.mxu0 0.0
        %1663 = vmatprep.subr.mxu0 0.0
        %1664 = vmatpush1.msra.mxu0 0.0
        %1665 = vmatprep.subr.mxu0 0.0
        %1666 = vmatpush1.msra.mxu0 0.0
        %1667 = vmatprep.subr.mxu0 0.0
        %1668 = vmatpush1.msra.mxu0 0.0
        %1669 = vmatprep.subr.mxu0 0.0
        %1670 = vmatpush1.msra.mxu0 0.0
        %1671 = vmatprep.subr.mxu0 0.0
        %1672 = vmatpush1.msra.mxu0 0.0
        %1673 = vmatprep.subr.mxu0 0.0
        %1674 = vmatpush1.msra.mxu0 0.0
        %1675 = vmatprep.subr.mxu0 0.0
        %1676 = vmatpush1.msra.mxu0 0.0
        %1677 = vmatprep.subr.mxu0 0.0
        %1678 = vmatpush1.msra.mxu0 0.0
        %1679 = vmatprep.subr.mxu0 0.0
        %1680 = vmatpush1.msra.mxu0 0.0
        %1681 = vmatprep.subr.mxu0 0.0
        %1682 = vmatpush1.msra.mxu0 0.0
        %1683 = vmatprep.subr.mxu0 0.0
        %1684 = vmatpush1.msra.mxu0 0.0
        %1685 = vmatprep.subr.mxu0 0.0
        %1686 = vmatpush1.msra.mxu0 0.0
        %1687 = vmatprep.subr.mxu0 0.0
        %1688 = vmatpush1.msra.mxu0 0.0
        %1689 = vmatprep.subr.mxu0 0.0
        %1690 = vmatpush1.msra.mxu0 0.0
        %1691 = vmatprep.subr.mxu0 0.0
        %1692 = vmatpush1.msra.mxu0 0.0
        %1693 = vmatprep.subr.mxu0 0.0
        %1694 = vmatpush1.msra.mxu0 0.0
        %1695 = vmatprep.subr.mxu0 0.0
        %1696 = vmatpush1.msra.mxu0 0.0
        %1697 = vmatprep.subr.mxu0 0.0
        %1698 = vmatpush1.msra.mxu0 0.0
        %1699 = vmatprep.subr.mxu0 0.0
        %1700 = vmatpush1.msra.mxu0 0.0
        %1701 = vmatprep.subr.mxu0 0.0
        %1702 = vmatpush1.msra.mxu0 0.0
        %1703 = vmatprep.subr.mxu0 0.0
        %1704 = vmatpush1.msra.mxu0 0.0
        %1705 = vmatprep.mubr.f32.mxu0 0.0
        %1706 = vmatmul.mubr.f32.gmra.mrb[0].mxu0 %v1639
        %v1707 = vpop.f32.mrb[0].mxu0
        %v1708 = vadd.f32 %v1637, %v1707
        %v1709 = vpop.f32.mrb[0].mxu0
        %1710 = vdwg.mxu0
        %v1711 = vmax.f32 %v1708, 0.0
        %1712 = vst.msk [vmem:[%s411] sm:$0xff] %vm930, %v1711
        %v1713 = vlaneseq
        %v1714 = vshrl.u32 %v1713, 7
        %v1715 = vsub.s32 4, %v1714
        %v1716 = vrot.slane %v586, %v1715
        %v1718 = vsel %vm930, %v1711, 0
        %1720 = vmatprep.subr.mxu0 0.0
        %1721 = vmatpush1.msra.mxu0 %v578
        %1722 = vmatprep.subr.mxu0 0.0
        %1723 = vmatpush1.msra.mxu0 %v579
        %1724 = vmatprep.subr.mxu0 0.0
        %1725 = vmatpush1.msra.mxu0 %v580
        %1726 = vmatprep.subr.mxu0 0.0
        %1727 = vmatpush1.msra.mxu0 %v581
        %1728 = vmatprep.subr.mxu0 0.0
        %1729 = vmatpush1.msra.mxu0 0.0
        %1730 = vmatprep.subr.mxu0 0.0
        %1731 = vmatpush1.msra.mxu0 0.0
        %1732 = vmatprep.subr.mxu0 0.0
        %1733 = vmatpush1.msra.mxu0 0.0
        %1734 = vmatprep.subr.mxu0 0.0
        %1735 = vmatpush1.msra.mxu0 0.0
        %1736 = vmatprep.subr.mxu0 0.0
        %1737 = vmatpush1.msra.mxu0 0.0
        %1738 = vmatprep.subr.mxu0 0.0
        %1739 = vmatpush1.msra.mxu0 0.0
        %1740 = vmatprep.subr.mxu0 0.0
        %1741 = vmatpush1.msra.mxu0 0.0
        %1742 = vmatprep.subr.mxu0 0.0
        %1743 = vmatpush1.msra.mxu0 0.0
        %1744 = vmatprep.subr.mxu0 0.0
        %1745 = vmatpush1.msra.mxu0 0.0
        %1746 = vmatprep.subr.mxu0 0.0
        %1747 = vmatpush1.msra.mxu0 0.0
        %1748 = vmatprep.subr.mxu0 0.0
        %1749 = vmatpush1.msra.mxu0 0.0
        %1750 = vmatprep.subr.mxu0 0.0
        %1751 = vmatpush1.msra.mxu0 0.0
        %1752 = vmatprep.subr.mxu0 0.0
        %1753 = vmatpush1.msra.mxu0 0.0
        %1754 = vmatprep.subr.mxu0 0.0
        %1755 = vmatpush1.msra.mxu0 0.0
        %1756 = vmatprep.subr.mxu0 0.0
        %1757 = vmatpush1.msra.mxu0 0.0
        %1758 = vmatprep.subr.mxu0 0.0
        %1759 = vmatpush1.msra.mxu0 0.0
        %1760 = vmatprep.subr.mxu0 0.0
        %1761 = vmatpush1.msra.mxu0 0.0
        %1762 = vmatprep.subr.mxu0 0.0
        %1763 = vmatpush1.msra.mxu0 0.0
        %1764 = vmatprep.subr.mxu0 0.0
        %1765 = vmatpush1.msra.mxu0 0.0
        %1766 = vmatprep.subr.mxu0 0.0
        %1767 = vmatpush1.msra.mxu0 0.0
        %1768 = vmatprep.subr.mxu0 0.0
        %1769 = vmatpush1.msra.mxu0 0.0
        %1770 = vmatprep.subr.mxu0 0.0
        %1771 = vmatpush1.msra.mxu0 0.0
        %1772 = vmatprep.subr.mxu0 0.0
        %1773 = vmatpush1.msra.mxu0 0.0
        %1774 = vmatprep.subr.mxu0 0.0
        %1775 = vmatpush1.msra.mxu0 0.0
        %1776 = vmatprep.subr.mxu0 0.0
        %1777 = vmatpush1.msra.mxu0 0.0
        %1778 = vmatprep.subr.mxu0 0.0
        %1779 = vmatpush1.msra.mxu0 0.0
        %1780 = vmatprep.subr.mxu0 0.0
        %1781 = vmatpush1.msra.mxu0 0.0
        %1782 = vmatprep.subr.mxu0 0.0
        %1783 = vmatpush1.msra.mxu0 0.0
        %1784 = vmatprep.mubr.f32.mxu0 0.0
        %1785 = vmatmul.mubr.f32.gmra.mrb[0].mxu0 %v1718
        %v1786 = vpop.f32.mrb[0].mxu0
        %v1787 = vadd.f32 %v1716, %v1786
        %v1788 = vpop.f32.mrb[0].mxu0
        %1789 = vdwg.mxu0
        %v1790 = vmax.f32 %v1787, 0.0
        %v1791 = vlaneseq
        %v1792 = vshrl.u32 %v1791, 7
        %v1793 = vsub.s32 5, %v1792
        %v1794 = vrot.slane %v586, %v1793
        %1795 = vrot.lane.b32.xlu0 %v582, 124
        %v1796 = vpop.permute.xlu0 %1795
        %1797 = vrot.lane.b32.xlu0 %v583, 124
        %v1798 = vpop.permute.xlu0 %1797
        %1799 = vrot.lane.b32.xlu0 %v584, 124
        %v1800 = vpop.permute.xlu0 %1799
        %1801 = vrot.lane.b32.xlu0 %v585, 124
        %v1802 = vpop.permute.xlu0 %1801
        %v1808 = vsel %vm930, %v1790, 0
        %1810 = vmatprep.subr.mxu0 0.0
        %1811 = vmatpush1.msra.mxu0 %v1796
        %1812 = vmatprep.subr.mxu0 0.0
        %1813 = vmatpush1.msra.mxu0 %v1798
        %1814 = vmatprep.subr.mxu0 0.0
        %1815 = vmatpush1.msra.mxu0 %v1800
        %1816 = vmatprep.subr.mxu0 0.0
        %1817 = vmatpush1.msra.mxu0 %v1802
        %1818 = vmatprep.subr.mxu0 0.0
        %1819 = vmatpush1.msra.mxu0 0.0
        %1820 = vmatprep.subr.mxu0 0.0
        %1821 = vmatpush1.msra.mxu0 0.0
        %1822 = vmatprep.subr.mxu0 0.0
        %1823 = vmatpush1.msra.mxu0 0.0
        %1824 = vmatprep.subr.mxu0 0.0
        %1825 = vmatpush1.msra.mxu0 0.0
        %1826 = vmatprep.subr.mxu0 0.0
        %1827 = vmatpush1.msra.mxu0 0.0
        %1828 = vmatprep.subr.mxu0 0.0
        %1829 = vmatpush1.msra.mxu0 0.0
        %1830 = vmatprep.subr.mxu0 0.0
        %1831 = vmatpush1.msra.mxu0 0.0
        %1832 = vmatprep.subr.mxu0 0.0
        %1833 = vmatpush1.msra.mxu0 0.0
        %1834 = vmatprep.subr.mxu0 0.0
        %1835 = vmatpush1.msra.mxu0 0.0
        %1836 = vmatprep.subr.mxu0 0.0
        %1837 = vmatpush1.msra.mxu0 0.0
        %1838 = vmatprep.subr.mxu0 0.0
        %1839 = vmatpush1.msra.mxu0 0.0
        %1840 = vmatprep.subr.mxu0 0.0
        %1841 = vmatpush1.msra.mxu0 0.0
        %1842 = vmatprep.subr.mxu0 0.0
        %1843 = vmatpush1.msra.mxu0 0.0
        %1844 = vmatprep.subr.mxu0 0.0
        %1845 = vmatpush1.msra.mxu0 0.0
        %1846 = vmatprep.subr.mxu0 0.0
        %1847 = vmatpush1.msra.mxu0 0.0
        %1848 = vmatprep.subr.mxu0 0.0
        %1849 = vmatpush1.msra.mxu0 0.0
        %1850 = vmatprep.subr.mxu0 0.0
        %1851 = vmatpush1.msra.mxu0 0.0
        %1852 = vmatprep.subr.mxu0 0.0
        %1853 = vmatpush1.msra.mxu0 0.0
        %1854 = vmatprep.subr.mxu0 0.0
        %1855 = vmatpush1.msra.mxu0 0.0
        %1856 = vmatprep.subr.mxu0 0.0
        %1857 = vmatpush1.msra.mxu0 0.0
        %1858 = vmatprep.subr.mxu0 0.0
        %1859 = vmatpush1.msra.mxu0 0.0
        %1860 = vmatprep.subr.mxu0 0.0
        %1861 = vmatpush1.msra.mxu0 0.0
        %1862 = vmatprep.subr.mxu0 0.0
        %1863 = vmatpush1.msra.mxu0 0.0
        %1864 = vmatprep.subr.mxu0 0.0
        %1865 = vmatpush1.msra.mxu0 0.0
        %1866 = vmatprep.subr.mxu0 0.0
        %1867 = vmatpush1.msra.mxu0 0.0
        %1868 = vmatprep.subr.mxu0 0.0
        %1869 = vmatpush1.msra.mxu0 0.0
        %1870 = vmatprep.subr.mxu0 0.0
        %1871 = vmatpush1.msra.mxu0 0.0
        %1872 = vmatprep.subr.mxu0 0.0
        %1873 = vmatpush1.msra.mxu0 0.0
        %1874 = vmatprep.mubr.f32.mxu0 0.0
        %1875 = vmatmul.mubr.f32.gmra.mrb[0].mxu0 %v1808
        %v1876 = vpop.f32.mrb[0].mxu0
        %v1877 = vadd.f32 %v1794, %v1876
        %v1878 = vpop.f32.mrb[0].mxu0
        %1879 = vdwg.mxu0
        %1880 = vxpose.xlu0.b32.start [1/16] %v1877, 128
        %1881 = vxpose.xlu0.b32.cont [2/16] 0.0, 128
        %1882 = vxpose.xlu0.b32.cont [3/16] 0.0, 128
        %1883 = vxpose.xlu0.b32.cont [4/16] 0.0, 128
        %1884 = vxpose.xlu0.b32.cont [5/16] 0.0, 128
        %1885 = vxpose.xlu0.b32.cont [6/16] 0.0, 128
        %1886 = vxpose.xlu0.b32.cont [7/16] 0.0, 128
        %1887 = vxpose.xlu0.b32.cont [8/16] 0.0, 128
        %1888 = vxpose.xlu0.b32.cont [9/16] 0.0, 128
        %1889 = vxpose.xlu0.b32.cont [10/16] 0.0, 128
        %1890 = vxpose.xlu0.b32.cont [11/16] 0.0, 128
        %1891 = vxpose.xlu0.b32.cont [12/16] 0.0, 128
        %1892 = vxpose.xlu0.b32.cont [13/16] 0.0, 128
        %1893 = vxpose.xlu0.b32.cont [14/16] 0.0, 128
        %1894 = vxpose.xlu0.b32.cont [15/16] 0.0, 128
        %1895 = vxpose.xlu0.b32.end [16/16] 0.0, 128
        %v1896 = vpop.trf.xlu0
        %v1897 = vpop.trf.xlu0
        %v1898 = vpop.trf.xlu0
        %v1899 = vpop.trf.xlu0
        %v1900 = vpop.trf.xlu0
        %v1901 = vpop.trf.xlu0
        %v1902 = vpop.trf.xlu0
        %v1903 = vpop.trf.xlu0
        %v1904 = vpop.trf.xlu0
        %v1905 = vpop.trf.xlu0
        %v1906 = vpop.trf.xlu0
        %v1907 = vpop.trf.xlu0
        %v1908 = vpop.trf.xlu0
        %v1909 = vpop.trf.xlu0
        %v1910 = vpop.trf.xlu0
        %v1911 = vpop.trf.xlu0
        %vm1912 = vcmask 57344
        %v1913 = vsel %vm1912, %v1896, -inf
        %1914 = vmax.xlane.f32.xlu0 %v1913
        %v1915 = vpop.xlane.xlu0 %1914
        %v1916 = vsub.f32 %v1896, %v1915
        %v1917 = vmul.f32 %v1916, 1.442695
        %v1918 = vpow.pop %v1917
        %v1919 = vsel %vm1912, %v1918, 0.0
        %1920 = vadd.xlane.f32.xlu0 %v1919
        %v1921 = vpop.xlane.xlu0 %1920
        %v1922 = vrcp.pop %v1921
        %v1923 = vmul.f32 %v1918, %v1922
        %1924 = vst.msk [vmem:[%s417] sm:$0x1] %vm1912, %v1923
        %s1925 = sand.u32 %s258, 1
        %s1926 = scalar_lea.sflag [#allocation4], %s1925
        %s1927 = sand.u32 %s258, 1
        %s1928 = smul.addr %s1927, 8
        %s1929 = scalar_lea.vmem [#allocation5], %s1928
        %s1930 = sand.u32 %s284, 1
        %s1931 = scalar_lea.sflag [#allocation7], %s1930
        %s1932 = sand.u32 %s284, 1
        %s1933 = scalar_lea.vmem [#allocation6], %s1932
        // Predicated region
        $region65: #{tpu_custom_call.1} parent=59 // pred_check
          %p1934 = pneg %p268
        $region66: #{tpu_custom_call.1} parent=59 // pred_check_branch
          %1936 = sbr.rel (%p1934) target = $region68
        $region67: #{tpu_custom_call.1} parent=59 // pred_region
          %s1938 = ssub.s32 128, 128
          %1939 = vsyncadd %s1926, %s1938
          %s1940 = smul.addr %s30, 128
          %s1941 = scalar_lea.hbm %s10, %s1940
          %s1943 = sshll.u32 %s1929, 4
          %s1944 = int_to_ptr.vmem [resolvable:$true] %s1943
          %1946 = dma.vmem_to_hbm [thread:$0]  %s1944, 128, %s1941, %s1926
        $region68: #{tpu_custom_call.1} parent=59 // pred_fallthru
          _
        // Predicated region
        $region69: #{tpu_custom_call.1} parent=59 // pred_check
          %p1947 = pneg %p294
        $region70: #{tpu_custom_call.1} parent=59 // pred_check_branch
          %1949 = sbr.rel (%p1947) target = $region72
        $region71: #{tpu_custom_call.1} parent=59 // pred_region
          %s1951 = ssub.s32 16, 16
          %1952 = vsyncadd %s1931, %s1951
          %s1953 = smul.addr %s30, 16
          %s1954 = scalar_lea.hbm %s11, %s1953
          %s1956 = sshll.u32 %s1933, 4
          %s1957 = int_to_ptr.vmem [resolvable:$true] %s1956
          %1959 = dma.vmem_to_hbm [thread:$0]  %s1957, 16, %s1954, %s1931
        $region72: #{tpu_custom_call.1} parent=59 // pred_fallthru
          _
      $region60: #{tpu_custom_call.1} parent=5 // pred_fallthru
        _
      %p1960 = scmp.le.s32.totalorder 2, %s25
      // Predicated region
      $region73: #{tpu_custom_call.1} parent=5 // pred_check
        %p1961 = pneg %p1960
      $region74: #{tpu_custom_call.1} parent=5 // pred_check_branch
        %1963 = sbr.rel (%p1961) target = $region76
      $region75: #{tpu_custom_call.1} parent=5 // pred_region
        %s1964 = ssub.s32 %s25, 2
        // Predicated region
        $region77: #{tpu_custom_call.1} parent=75 // pred_check
          %p1965 = pneg %p274
        $region78: #{tpu_custom_call.1} parent=75 // pred_check_branch
          %1967 = sbr.rel (%p1965) target = $region80
        $region79: #{tpu_custom_call.1} parent=75 // pred_region
          %s1968 = sand.u32 %s259, 1
          %s1969 = scalar_lea.sflag [#allocation4], %s1968
          %s1970 = sand.u32 %s259, 1
          %s1971 = smul.addr %s1970, 8
          %s1972 = scalar_lea.vmem [#allocation5], %s1971
          %1973 = dma.done %s1969, 128
        $region80: #{tpu_custom_call.1} parent=75 // pred_fallthru
          _
        // Predicated region
        $region81: #{tpu_custom_call.1} parent=75 // pred_check
          %p1974 = pneg %p300
        $region82: #{tpu_custom_call.1} parent=75 // pred_check_branch
          %1976 = sbr.rel (%p1974) target = $region84
        $region83: #{tpu_custom_call.1} parent=75 // pred_region
          %s1977 = sand.u32 %s285, 1
          %s1978 = scalar_lea.sflag [#allocation7], %s1977
          %s1979 = sand.u32 %s285, 1
          %s1980 = scalar_lea.vmem [#allocation6], %s1979
          %1981 = dma.done %s1978, 16
        $region84: #{tpu_custom_call.1} parent=75 // pred_fallthru
          _
      $region76: #{tpu_custom_call.1} parent=5 // pred_fallthru
        _
    $region6: #{tpu_custom_call.1} parent=1 // loop_footer
      %s29 = sadd.s32 1, %s25
    $region7: #{tpu_custom_call.1} parent=1 // loop_footer_branch
      %24 = sbr.rel target = $region3
    $region8: #{tpu_custom_call.1} parent=1 // loop_exit
      _
    %1982 = vsyncpa [#allocation3], 1
    %s1983 = scalar_lea.sflag [#allocation3], 1
    %1984 = vsyncpa %s1983, 1
    %1985 = vsyncpa [#allocation4], 1
    %s1986 = scalar_lea.sflag [#allocation4], 1
    %1987 = vsyncpa %s1986, 1
    %1988 = vsyncpa [#allocation7], 1
    %s1989 = scalar_lea.sflag [#allocation7], 1
    %1990 = vsyncpa %s1989, 1

</llo_original>
